<compile_context>
chip_gen: v6e
topology: v6e:2x2x1
jax: 0.10.0
libtpu: 0.0.40
codegen_flags: <defaults>
</compile_context>

<pallas_src>
import functools
import math

import jax
import jax.numpy as jnp
from jax.experimental import pallas as pl
from jax.experimental.pallas import tpu as pltpu

# ---------------- synthetic Gemma config (small) ----------------
VOCAB = 128
HIDDEN = 32
INTERMEDIATE = 64
N_LAYERS = 2
N_HEADS = 4
N_KV_HEADS = 2
HEAD_DIM = 16
RMS_EPS = 1e-6
ROPE_THETA = 10000.0

# MXU operand dtype.  float32 preserves the reference module's numerics bit-for
# behaviourally; flip to jnp.bfloat16 for ~2-3x MXU throughput and halved
# weight/activation DMA on v6e/v7x (accumulation stays f32 via
# preferred_element_type; RMSNorm / softmax / GELU math stays f32 either way,
# which also keeps the v5e VPU/EUP path in f32 as recommended).
MXU_DTYPE = jnp.float32


def _vmem():
    return pl.BlockSpec(memory_space=pltpu.MemorySpace.VMEM)


# ---------------- Pallas kernels ----------------
def norm_matmul_kernel(x_ref, g_ref, w_ref, o_ref, *, eps):
    """Fused RMSNorm (Gemma (1+w) variant) + matmul with a (K, N) weight."""
    x = x_ref[...].astype(jnp.float32)                       # (M, K)
    var = jnp.mean(x * x, axis=-1, keepdims=True)
    xn = x * jax.lax.rsqrt(var + eps) * (1.0 + g_ref[...].astype(jnp.float32))
    o_ref[...] = jnp.dot(
        xn.astype(MXU_DTYPE), w_ref[...].astype(MXU_DTYPE),
        preferred_element_type=jnp.float32).astype(o_ref.dtype)


def oproj_mlp_kernel(attn_ref, res_ref, wo_ref, g_ref, wg_ref, wu_ref, wd_ref,
                     o_ref, *, eps):
    """Fused: o_proj + residual add + post-attention RMSNorm + gated-GELU MLP
    + residual add.  All weights are in (K, N) layout."""
    attn = attn_ref[...].astype(jnp.float32)                 # (M, nH*D)
    res = res_ref[...].astype(jnp.float32)                   # (M, H)

    h = res + jnp.dot(attn.astype(MXU_DTYPE), wo_ref[...].astype(MXU_DTYPE),
                      preferred_element_type=jnp.float32)    # (M, H)

    var = jnp.mean(h * h, axis=-1, keepdims=True)
    xn = h * jax.lax.rsqrt(var + eps) * (1.0 + g_ref[...].astype(jnp.float32))
    xn_m = xn.astype(MXU_DTYPE)

    gate = jnp.dot(xn_m, wg_ref[...].astype(MXU_DTYPE),
                   preferred_element_type=jnp.float32)       # (M, I)
    up = jnp.dot(xn_m, wu_ref[...].astype(MXU_DTYPE),
                 preferred_element_type=jnp.float32)         # (M, I)
    c = 0.7978845608028654                                   # sqrt(2/pi), tanh-GELU
    act = 0.5 * gate * (1.0 + jnp.tanh(c * (gate + 0.044715 * gate * gate * gate)))
    hidden = act * up

    out = h + jnp.dot(hidden.astype(MXU_DTYPE), wd_ref[...].astype(MXU_DTYPE),
                      preferred_element_type=jnp.float32)
    o_ref[...] = out.astype(o_ref.dtype)


def attention_kernel(qkv_ref, cos_ref, sin_ref, mask_ref, o_ref, *,
                     scale, n_heads, n_kv_heads, head_dim):
    """Per-batch attention: RoPE + GQA attention for all heads in one program.

    qkv_ref holds the fused projection [q | k | v] of width (nH + 2*nKV) * D.
    GQA is handled by slicing the shared kv-head in-register (no repeated K/V
    in HBM).  The R query heads of a kv-group are folded onto the sublane (row)
    axis so QK^T / PV are single 2-D MXU matmuls per group.  The sin table has
    rotate_half's sign pre-folded (first half negated)."""
    S = cos_ref.shape[1]
    D = head_dim
    R = n_heads // n_kv_heads
    half = D // 2

    qkv = qkv_ref[0].astype(jnp.float32)                     # (S, (nH+2nKV)*D)
    cos = cos_ref[0].astype(jnp.float32)                     # (S, D)
    sin = sin_ref[0].astype(jnp.float32)                     # (S, D), sign-folded
    mask = mask_ref[0, 0].astype(jnp.float32)                # (S, S)

    k_off = n_heads * D
    v_off = (n_heads + n_kv_heads) * D

    def rope(x):                                             # x: (S, D)
        rolled = jnp.concatenate([x[:, half:], x[:, :half]], axis=-1)
        return x * cos + rolled * sin

    # causal mask replicated for the R query heads folded into the row axis
    mask_rep = jnp.concatenate([mask] * R, axis=0)           # (R*S, S)
    dims = (((1,), (1,)), ((), ()))                          # contract trailing dims

    head_outs = [None] * n_heads
    for g in range(n_kv_heads):
        k_g = rope(qkv[:, k_off + g * D: k_off + (g + 1) * D])        # (S, D)
        v_g = qkv[:, v_off + g * D: v_off + (g + 1) * D]              # (S, D)
        # query heads g*R .. g*R+R-1 share this kv head (repeat_kv semantics)
        q_g = jnp.concatenate(
            [rope(qkv[:, (g * R + r) * D: (g * R + r + 1) * D]) for r in range(R)],
            axis=0)                                                   # (R*S, D)

        scores = jax.lax.dot_general(
            q_g.astype(MXU_DTYPE), k_g.astype(MXU_DTYPE), dims,
            preferred_element_type=jnp.float32) * scale               # (R*S, S)
        scores = scores + mask_rep                                    # mask added in f32
        m = jnp.max(scores, axis=-1, keepdims=True)
        e = jnp.exp(scores - m)
        p = e * pl.reciprocal(jnp.sum(e, axis=-1, keepdims=True), approx=True)
        out_g = jnp.dot(p.astype(MXU_DTYPE), v_g.astype(MXU_DTYPE),
                        preferred_element_type=jnp.float32)           # (R*S, D)
        for r in range(R):
            head_outs[g * R + r] = out_g[r * S:(r + 1) * S, :]

    # merge heads -> (S, nH*D), matching torch's transpose(1,2).reshape(...)
    o_ref[0] = jnp.concatenate(head_outs, axis=-1).astype(o_ref.dtype)


# ---------------- pallas_call wrappers ----------------
def norm_matmul(x2d, ln_w, w, out_dtype=None, eps=RMS_EPS):
    m = x2d.shape[0]
    n = w.shape[1]
    out_dtype = x2d.dtype if out_dtype is None else out_dtype
    return pl.pallas_call(
        functools.partial(norm_matmul_kernel, eps=eps),
        out_shape=jax.ShapeDtypeStruct((m, n), out_dtype),
        in_specs=[_vmem(), _vmem(), _vmem()],
        out_specs=_vmem(),
    )(x2d, ln_w, w)


def oproj_mlp(attn2d, res2d, wo, ln_w, wg, wu, wd, eps=RMS_EPS):
    m, h = res2d.shape
    return pl.pallas_call(
        functools.partial(oproj_mlp_kernel, eps=eps),
        out_shape=jax.ShapeDtypeStruct((m, h), res2d.dtype),
        in_specs=[_vmem()] * 7,
        out_specs=_vmem(),
    )(attn2d, res2d, wo, ln_w, wg, wu, wd)


def attention(qkv, cos, sin, mask):
    B, S, W = qkv.shape
    D = HEAD_DIM
    scale = 1.0 / math.sqrt(D)
    return pl.pallas_call(
        functools.partial(attention_kernel, scale=scale, n_heads=N_HEADS,
                          n_kv_heads=N_KV_HEADS, head_dim=D),
        out_shape=jax.ShapeDtypeStruct((B, S, N_HEADS * D), qkv.dtype),
        grid=(B,),
        in_specs=[pl.BlockSpec((1, S, W), lambda b: (b, 0, 0)),
                  pl.BlockSpec((1, S, D), lambda b: (b, 0, 0)),
                  pl.BlockSpec((1, S, D), lambda b: (b, 0, 0)),
                  pl.BlockSpec((1, 1, S, S), lambda b: (b, 0, 0, 0))],
        out_specs=pl.BlockSpec((1, S, N_HEADS * D), lambda b: (b, 0, 0)),
        compiler_params=pltpu.CompilerParams(
            dimension_semantics=("parallel",)),   # 2 grid units -> both v7x TCs
    )(qkv, cos, sin, mask)


# ---------------- plain JAX glue ----------------
def rope_cos_sin(position_ids, head_dim, theta, dtype):
    inv_freq = 1.0 / (theta ** (jnp.arange(0, head_dim, 2, dtype=jnp.float32) / head_dim))
    freqs = position_ids[:, :, None].astype(jnp.float32) * inv_freq[None, None, :]
    emb = jnp.concatenate([freqs, freqs], axis=-1)           # (B, S, D)
    cos = jnp.cos(emb)
    sin_half = jnp.sin(freqs)
    # Fold rotate_half's sign into the table:
    #   rotate_half(x) * sin == roll(x, D/2) * concat(-sin_half, sin_half)
    sin_signed = jnp.concatenate([-sin_half, sin_half], axis=-1)
    return cos.astype(dtype), sin_signed.astype(dtype)


def gemma_forward(params, inputs_embeds, attention_mask, position_ids):
    B, S, H = inputs_embeds.shape
    dtype = inputs_embeds.dtype
    # Gemma embedding scaling
    hs = (inputs_embeds * jnp.asarray(H ** 0.5, dtype=dtype)).reshape(B * S, H)
    cos, sin = rope_cos_sin(position_ids, HEAD_DIM, ROPE_THETA, dtype)

    for layer in params["layers"]:
        # (1) fused input RMSNorm + QKV projection -> lane-dense (B*S, 128)
        qkv = norm_matmul(hs, layer["input_ln"], layer["wqkv"])
        # (2) attention over all heads, per batch
        attn = attention(qkv.reshape(B, S, -1), cos, sin, attention_mask)
        # (3) fused o_proj + residual + post RMSNorm + gated MLP + residual
        hs = oproj_mlp(attn.reshape(B * S, -1), hs, layer["wo"],
                       layer["post_ln"], layer["wg"], layer["wu"], layer["wd"])

    # final RMSNorm + lm_head, logits in f32
    logits = norm_matmul(hs, params["final_norm"], params["lm_head"],
                         out_dtype=jnp.float32)
    return {"logits": logits.reshape(B, S, VOCAB)}


def init_params(key):
    def w(k, shape, scale=0.02):
        return scale * jax.random.normal(k, shape, dtype=jnp.float32)

    keys = jax.random.split(key, N_LAYERS + 1)
    layers = []
    for i in range(N_LAYERS):
        lk = jax.random.split(keys[i], 7)
        # generated in torch nn.Linear (out_features, in_features) layout, then
        # fused / pre-transposed ONCE into (K, N) layout for the kernels.
        q_proj = w(lk[0], (N_HEADS * HEAD_DIM, HIDDEN))
        k_proj = w(lk[1], (N_KV_HEADS * HEAD_DIM, HIDDEN))
        v_proj = w(lk[2], (N_KV_HEADS * HEAD_DIM, HIDDEN))
        o_proj = w(lk[3], (HIDDEN, N_HEADS * HEAD_DIM))
        gate_proj = w(lk[4], (INTERMEDIATE, HIDDEN))
        up_proj = w(lk[5], (INTERMEDIATE, HIDDEN))
        down_proj = w(lk[6], (HIDDEN, INTERMEDIATE))
        layers.append({
            "input_ln": jnp.zeros((1, HIDDEN), jnp.float32),  # GemmaRMSNorm init = 0
            "post_ln": jnp.zeros((1, HIDDEN), jnp.float32),
            "wqkv": jnp.concatenate([q_proj, k_proj, v_proj], axis=0).T,  # (H, 128)
            "wo": o_proj.T,                                               # (nH*D, H)
            "wg": gate_proj.T,                                            # (H, I)
            "wu": up_proj.T,                                              # (H, I)
            "wd": down_proj.T,                                            # (I, H)
        })
    lm_head = w(jax.random.split(keys[-1], 1)[0], (VOCAB, HIDDEN))
    return {
        "layers": layers,
        "final_norm": jnp.zeros((1, HIDDEN), jnp.float32),
        "lm_head": lm_head.T,                                             # (H, V)
    }


if __name__ == "__main__":
    B, S = 2, 8
    key = jax.random.PRNGKey(0)
    k_params, k_embeds = jax.random.split(key)
    params = init_params(k_params)
    inputs_embeds = jax.random.normal(k_embeds, (B, S, HIDDEN), dtype=jnp.float32)
    position_ids = jnp.broadcast_to(jnp.arange(S, dtype=jnp.int32)[None, :], (B, S))
    causal = jnp.tril(jnp.ones((S, S), dtype=bool))
    attention_mask = jnp.where(causal, 0.0, -1e9).astype(jnp.float32)[None, None, :, :]
    attention_mask = jnp.broadcast_to(attention_mask, (B, 1, S, S))

    out = jax.jit(gemma_forward)(params, inputs_embeds, attention_mask, position_ids)
    jax.block_until_ready(out["logits"])
    assert out["logits"].shape == (B, S, VOCAB)
    assert out["logits"].dtype == jnp.float32
    print("KERNEL_OK")
</pallas_src>

<mosaic_0001>
module attributes {stable_mosaic.version = 11 : i64} {
  func.func @norm_matmul_kernel(%arg0: memref<16x32xf32, #tpu.memory_space<vmem>>, %arg1: memref<1x32xf32, #tpu.memory_space<vmem>>, %arg2: memref<32x128xf32, #tpu.memory_space<vmem>>, %arg3: memref<16x128xf32, #tpu.memory_space<vmem>>) attributes {dimension_semantics = [], scalar_prefetch = 0 : i64, scratch_operands = 0 : i64, tpu.core_type = #tpu.core_type<tc>} {
    %c0 = arith.constant 0 : index
    %c0_0 = arith.constant 0 : index
    %0 = vector.load %arg0[%c0, %c0_0] : memref<16x32xf32, #tpu.memory_space<vmem>>, vector<16x32xf32>
    %1 = arith.mulf %0, %0 : vector<16x32xf32>
    %cst = arith.constant dense<0.000000e+00> : vector<16xf32>
    %2 = vector.multi_reduction <add>, %1, %cst [1] : vector<16x32xf32> to vector<16xf32>
    %3 = vector.shape_cast %2 : vector<16xf32> to vector<16x1xf32>
    %cst_1 = arith.constant 3.200000e+01 : f32
    %4 = vector.broadcast %cst_1 : f32 to vector<16x1xf32>
    %5 = arith.divf %3, %4 : vector<16x1xf32>
    %cst_2 = arith.constant 9.99999997E-7 : f32
    %6 = vector.broadcast %cst_2 : f32 to vector<16x1xf32>
    %7 = arith.addf %5, %6 : vector<16x1xf32>
    %8 = math.rsqrt %7 : vector<16x1xf32>
    %9 = vector.broadcast %8 : vector<16x1xf32> to vector<16x32xf32>
    %10 = arith.mulf %0, %9 : vector<16x32xf32>
    %c0_3 = arith.constant 0 : index
    %c0_4 = arith.constant 0 : index
    %11 = vector.load %arg1[%c0_3, %c0_4] : memref<1x32xf32, #tpu.memory_space<vmem>>, vector<1x32xf32>
    %cst_5 = arith.constant 1.000000e+00 : f32
    %12 = vector.broadcast %cst_5 : f32 to vector<1x32xf32>
    %13 = arith.addf %12, %11 : vector<1x32xf32>
    %14 = vector.broadcast %13 : vector<1x32xf32> to vector<16x32xf32>
    %15 = arith.mulf %10, %14 : vector<16x32xf32>
    %c0_6 = arith.constant 0 : index
    %c0_7 = arith.constant 0 : index
    %16 = vector.load %arg2[%c0_6, %c0_7] : memref<32x128xf32, #tpu.memory_space<vmem>>, vector<32x128xf32>
    %cst_8 = arith.constant dense<0.000000e+00> : vector<16x128xf32>
    %17 = tpu.matmul %15, %16, %cst_8 {dimension_numbers = #tpu.dot_dimension_numbers<[1], [0], [0], [1], [0, 0, 1, 1], [], []>} : vector<16x32xf32>, vector<32x128xf32>, vector<16x128xf32> -> vector<16x128xf32>
    %c0_9 = arith.constant 0 : index
    %c0_10 = arith.constant 0 : index
    %18 = vector.load %arg3[%c0_9, %c0_10] : memref<16x128xf32, #tpu.memory_space<vmem>>, vector<16x128xf32>
    tpu.vector_store %arg3[%c0_9, %c0_10], %17 {strides = array<i32>} : memref<16x128xf32, #tpu.memory_space<vmem>>, vector<16x128xf32>,
    return
  }
}

module attributes {stable_mosaic.version = 11 : i64} {
  func.func @attention_kernel(%arg0: i32, %arg1: memref<1x8x128xf32, #tpu.memory_space<vmem>>, %arg2: memref<1x8x16xf32, #tpu.memory_space<vmem>>, %arg3: memref<1x8x16xf32, #tpu.memory_space<vmem>>, %arg4: memref<1x1x8x8xf32, #tpu.memory_space<vmem>>, %arg5: memref<1x8x64xf32, #tpu.memory_space<vmem>>) attributes {dimension_semantics = [#tpu.dimension_semantics<parallel>], iteration_bounds = array<i64: 2>, scalar_prefetch = 0 : i64, scratch_operands = 0 : i64, tpu.core_type = #tpu.core_type<tc>, window_params = [{transform_indices = @transform_0, window_bounds = array<i64: 1, 8, 128>}, {transform_indices = @transform_1, window_bounds = array<i64: 1, 8, 16>}, {transform_indices = @transform_2, window_bounds = array<i64: 1, 8, 16>}, {transform_indices = @transform_3, window_bounds = array<i64: 1, 1, 8, 8>}, {transform_indices = @transform_4, window_bounds = array<i64: 1, 8, 64>}]} {
    %c0 = arith.constant 0 : index
    %c0_0 = arith.constant 0 : index
    %c0_1 = arith.constant 0 : index
    %0 = vector.load %arg1[%c0, %c0_0, %c0_1] : memref<1x8x128xf32, #tpu.memory_space<vmem>>, vector<1x8x128xf32>
    %1 = vector.shape_cast %0 : vector<1x8x128xf32> to vector<8x128xf32>
    %c0_2 = arith.constant 0 : index
    %c0_3 = arith.constant 0 : index
    %c0_4 = arith.constant 0 : index
    %2 = vector.load %arg2[%c0_2, %c0_3, %c0_4] : memref<1x8x16xf32, #tpu.memory_space<vmem>>, vector<1x8x16xf32>
    %3 = vector.shape_cast %2 : vector<1x8x16xf32> to vector<8x16xf32>
    %c0_5 = arith.constant 0 : index
    %c0_6 = arith.constant 0 : index
    %c0_7 = arith.constant 0 : index
    %4 = vector.load %arg3[%c0_5, %c0_6, %c0_7] : memref<1x8x16xf32, #tpu.memory_space<vmem>>, vector<1x8x16xf32>
    %5 = vector.shape_cast %4 : vector<1x8x16xf32> to vector<8x16xf32>
    %c0_8 = arith.constant 0 : index
    %c0_9 = arith.constant 0 : index
    %c0_10 = arith.constant 0 : index
    %c0_11 = arith.constant 0 : index
    %6 = vector.load %arg4[%c0_8, %c0_9, %c0_10, %c0_11] : memref<1x1x8x8xf32, #tpu.memory_space<vmem>>, vector<1x1x8x8xf32>
    %7 = vector.shape_cast %6 : vector<1x1x8x8xf32> to vector<8x8xf32>
    %8 = tpu.concatenate %7, %7 in 0 : vector<8x8xf32>, vector<8x8xf32> -> vector<16x8xf32>
    %9 = vector.extract_strided_slice %1 {offsets = [0, 64], sizes = [8, 16], strides = [1, 1]} : vector<8x128xf32> to vector<8x16xf32>
    %10 = vector.extract_strided_slice %9 {offsets = [0, 8], sizes = [8, 8], strides = [1, 1]} : vector<8x16xf32> to vector<8x8xf32>
    %11 = vector.extract_strided_slice %9 {offsets = [0, 0], sizes = [8, 8], strides = [1, 1]} : vector<8x16xf32> to vector<8x8xf32>
    %12 = tpu.concatenate %10, %11 in 1 : vector<8x8xf32>, vector<8x8xf32> -> vector<8x16xf32>
    %13 = arith.mulf %9, %3 : vector<8x16xf32>
    %14 = arith.mulf %12, %5 : vector<8x16xf32>
    %15 = arith.addf %13, %14 : vector<8x16xf32>
    %16 = vector.extract_strided_slice %1 {offsets = [0, 96], sizes = [8, 16], strides = [1, 1]} : vector<8x128xf32> to vector<8x16xf32>
    %17 = vector.extract_strided_slice %1 {offsets = [0, 0], sizes = [8, 16], strides = [1, 1]} : vector<8x128xf32> to vector<8x16xf32>
    %18 = vector.extract_strided_slice %17 {offsets = [0, 8], sizes = [8, 8], strides = [1, 1]} : vector<8x16xf32> to vector<8x8xf32>
    %19 = vector.extract_strided_slice %17 {offsets = [0, 0], sizes = [8, 8], strides = [1, 1]} : vector<8x16xf32> to vector<8x8xf32>
    %20 = tpu.concatenate %18, %19 in 1 : vector<8x8xf32>, vector<8x8xf32> -> vector<8x16xf32>
    %21 = arith.mulf %17, %3 : vector<8x16xf32>
    %22 = arith.mulf %20, %5 : vector<8x16xf32>
    %23 = arith.addf %21, %22 : vector<8x16xf32>
    %24 = vector.extract_strided_slice %1 {offsets = [0, 16], sizes = [8, 16], strides = [1, 1]} : vector<8x128xf32> to vector<8x16xf32>
    %25 = vector.extract_strided_slice %24 {offsets = [0, 8], sizes = [8, 8], strides = [1, 1]} : vector<8x16xf32> to vector<8x8xf32>
    %26 = vector.extract_strided_slice %24 {offsets = [0, 0], sizes = [8, 8], strides = [1, 1]} : vector<8x16xf32> to vector<8x8xf32>
    %27 = tpu.concatenate %25, %26 in 1 : vector<8x8xf32>, vector<8x8xf32> -> vector<8x16xf32>
    %28 = arith.mulf %24, %3 : vector<8x16xf32>
    %29 = arith.mulf %27, %5 : vector<8x16xf32>
    %30 = arith.addf %28, %29 : vector<8x16xf32>
    %31 = tpu.concatenate %23, %30 in 0 : vector<8x16xf32>, vector<8x16xf32> -> vector<16x16xf32>
    %cst = arith.constant dense<0.000000e+00> : vector<16x8xf32>
    %32 = tpu.matmul %31, %15, %cst {dimension_numbers = #tpu.dot_dimension_numbers<[1], [1], [0], [0], [0, 0, 1, 0], [], []>} : vector<16x16xf32>, vector<8x16xf32>, vector<16x8xf32> -> vector<16x8xf32>
    %cst_12 = arith.constant 2.500000e-01 : f32
    %33 = vector.broadcast %cst_12 : f32 to vector<16x8xf32>
    %34 = arith.mulf %32, %33 : vector<16x8xf32>
    %35 = arith.addf %34, %8 : vector<16x8xf32>
    %cst_13 = arith.constant dense<0xFF800000> : vector<16xf32>
    %36 = vector.multi_reduction <maximumf>, %35, %cst_13 [1] : vector<16x8xf32> to vector<16xf32>
    %37 = vector.shape_cast %36 : vector<16xf32> to vector<16x1xf32>
    %38 = vector.broadcast %37 : vector<16x1xf32> to vector<16x8xf32>
    %39 = arith.subf %35, %38 : vector<16x8xf32>
    %40 = math.exp %39 : vector<16x8xf32>
    %cst_14 = arith.constant dense<0.000000e+00> : vector<16xf32>
    %41 = vector.multi_reduction <add>, %40, %cst_14 [1] : vector<16x8xf32> to vector<16xf32>
    %42 = vector.shape_cast %41 : vector<16xf32> to vector<16x1xf32>
    %43 = tpu.reciprocal %42 {approx = true} : vector<16x1xf32> -> vector<16x1xf32>
    %44 = vector.broadcast %43 : vector<16x1xf32> to vector<16x8xf32>
    %45 = arith.mulf %40, %44 : vector<16x8xf32>
    %cst_15 = arith.constant dense<0.000000e+00> : vector<16x16xf32>
    %46 = tpu.matmul %45, %16, %cst_15 {dimension_numbers = #tpu.dot_dimension_numbers<[1], [0], [0], [1], [0, 0, 1, 1], [], []>} : vector<16x8xf32>, vector<8x16xf32>, vector<16x16xf32> -> vector<16x16xf32>
    %47 = vector.extract_strided_slice %46 {offsets = [0, 0], sizes = [8, 16], strides = [1, 1]} : vector<16x16xf32> to vector<8x16xf32>
    %48 = vector.extract_strided_slice %46 {offsets = [8, 0], sizes = [8, 16], strides = [1, 1]} : vector<16x16xf32> to vector<8x16xf32>
    %49 = vector.extract_strided_slice %1 {offsets = [0, 80], sizes = [8, 16], strides = [1, 1]} : vector<8x128xf32> to vector<8x16xf32>
    %50 = vector.extract_strided_slice %49 {offsets = [0, 8], sizes = [8, 8], strides = [1, 1]} : vector<8x16xf32> to vector<8x8xf32>
    %51 = vector.extract_strided_slice %49 {offsets = [0, 0], sizes = [8, 8], strides = [1, 1]} : vector<8x16xf32> to vector<8x8xf32>
    %52 = tpu.concatenate %50, %51 in 1 : vector<8x8xf32>, vector<8x8xf32> -> vector<8x16xf32>
    %53 = arith.mulf %49, %3 : vector<8x16xf32>
    %54 = arith.mulf %52, %5 : vector<8x16xf32>
    %55 = arith.addf %53, %54 : vector<8x16xf32>
    %56 = vector.extract_strided_slice %1 {offsets = [0, 112], sizes = [8, 16], strides = [1, 1]} : vector<8x128xf32> to vector<8x16xf32>
    %57 = vector.extract_strided_slice %1 {offsets = [0, 32], sizes = [8, 16], strides = [1, 1]} : vector<8x128xf32> to vector<8x16xf32>
    %58 = vector.extract_strided_slice %57 {offsets = [0, 8], sizes = [8, 8], strides = [1, 1]} : vector<8x16xf32> to vector<8x8xf32>
    %59 = vector.extract_strided_slice %57 {offsets = [0, 0], sizes = [8, 8], strides = [1, 1]} : vector<8x16xf32> to vector<8x8xf32>
    %60 = tpu.concatenate %58, %59 in 1 : vector<8x8xf32>, vector<8x8xf32> -> vector<8x16xf32>
    %61 = arith.mulf %57, %3 : vector<8x16xf32>
    %62 = arith.mulf %60, %5 : vector<8x16xf32>
    %63 = arith.addf %61, %62 : vector<8x16xf32>
    %64 = vector.extract_strided_slice %1 {offsets = [0, 48], sizes = [8, 16], strides = [1, 1]} : vector<8x128xf32> to vector<8x16xf32>
    %65 = vector.extract_strided_slice %64 {offsets = [0, 8], sizes = [8, 8], strides = [1, 1]} : vector<8x16xf32> to vector<8x8xf32>
    %66 = vector.extract_strided_slice %64 {offsets = [0, 0], sizes = [8, 8], strides = [1, 1]} : vector<8x16xf32> to vector<8x8xf32>
    %67 = tpu.concatenate %65, %66 in 1 : vector<8x8xf32>, vector<8x8xf32> -> vector<8x16xf32>
    %68 = arith.mulf %64, %3 : vector<8x16xf32>
    %69 = arith.mulf %67, %5 : vector<8x16xf32>
    %70 = arith.addf %68, %69 : vector<8x16xf32>
    %71 = tpu.concatenate %63, %70 in 0 : vector<8x16xf32>, vector<8x16xf32> -> vector<16x16xf32>
    %cst_16 = arith.constant dense<0.000000e+00> : vector<16x8xf32>
    %72 = tpu.matmul %71, %55, %cst_16 {dimension_numbers = #tpu.dot_dimension_numbers<[1], [1], [0], [0], [0, 0, 1, 0], [], []>} : vector<16x16xf32>, vector<8x16xf32>, vector<16x8xf32> -> vector<16x8xf32>
    %cst_17 = arith.constant 2.500000e-01 : f32
    %73 = vector.broadcast %cst_17 : f32 to vector<16x8xf32>
    %74 = arith.mulf %72, %73 : vector<16x8xf32>
    %75 = arith.addf %74, %8 : vector<16x8xf32>
    %cst_18 = arith.constant dense<0xFF800000> : vector<16xf32>
    %76 = vector.multi_reduction <maximumf>, %75, %cst_18 [1] : vector<16x8xf32> to vector<16xf32>
    %77 = vector.shape_cast %76 : vector<16xf32> to vector<16x1xf32>
    %78 = vector.broadcast %77 : vector<16x1xf32> to vector<16x8xf32>
    %79 = arith.subf %75, %78 : vector<16x8xf32>
    %80 = math.exp %79 : vector<16x8xf32>
    %cst_19 = arith.constant dense<0.000000e+00> : vector<16xf32>
    %81 = vector.multi_reduction <add>, %80, %cst_19 [1] : vector<16x8xf32> to vector<16xf32>
    %82 = vector.shape_cast %81 : vector<16xf32> to vector<16x1xf32>
    %83 = tpu.reciprocal %82 {approx = true} : vector<16x1xf32> -> vector<16x1xf32>
    %84 = vector.broadcast %83 : vector<16x1xf32> to vector<16x8xf32>
    %85 = arith.mulf %80, %84 : vector<16x8xf32>
    %cst_20 = arith.constant dense<0.000000e+00> : vector<16x16xf32>
    %86 = tpu.matmul %85, %56, %cst_20 {dimension_numbers = #tpu.dot_dimension_numbers<[1], [0], [0], [1], [0, 0, 1, 1], [], []>} : vector<16x8xf32>, vector<8x16xf32>, vector<16x16xf32> -> vector<16x16xf32>
    %87 = vector.extract_strided_slice %86 {offsets = [0, 0], sizes = [8, 16], strides = [1, 1]} : vector<16x16xf32> to vector<8x16xf32>
    %88 = vector.extract_strided_slice %86 {offsets = [8, 0], sizes = [8, 16], strides = [1, 1]} : vector<16x16xf32> to vector<8x16xf32>
    %89 = tpu.concatenate %47, %48, %87, %88 in 1 : vector<8x16xf32>, vector<8x16xf32>, vector<8x16xf32>, vector<8x16xf32> -> vector<8x64xf32>
    %c0_21 = arith.constant 0 : index
    %c0_22 = arith.constant 0 : index
    %c0_23 = arith.constant 0 : index
    %90 = vector.load %arg5[%c0_21, %c0_22, %c0_23] : memref<1x8x64xf32, #tpu.memory_space<vmem>>, vector<1x8x64xf32>
    %91 = vector.shape_cast %90 : vector<1x8x64xf32> to vector<8x64xf32>
    %92 = vector.shape_cast %89 : vector<8x64xf32> to vector<1x8x64xf32>
    tpu.vector_store %arg5[%c0_21, %c0_22, %c0_23], %92 {strides = array<i32>} : memref<1x8x64xf32, #tpu.memory_space<vmem>>, vector<1x8x64xf32>,
    return
  }
  func.func @transform_0(%arg0: i32) -> (i32, i32, i32) {
    %c0_i32 = arith.constant 0 : i32
    %c0_i32_0 = arith.constant 0 : i32
    %c0_i32_1 = arith.constant 0 : i32
    return %arg0, %c0_i32, %c0_i32_0 : i32, i32, i32
  }
  func.func @transform_1(%arg0: i32) -> (i32, i32, i32) {
    %c0_i32 = arith.constant 0 : i32
    %c0_i32_0 = arith.constant 0 : i32
    %c0_i32_1 = arith.constant 0 : i32
    return %arg0, %c0_i32, %c0_i32_0 : i32, i32, i32
  }
  func.func @transform_2(%arg0: i32) -> (i32, i32, i32) {
    %c0_i32 = arith.constant 0 : i32
    %c0_i32_0 = arith.constant 0 : i32
    %c0_i32_1 = arith.constant 0 : i32
    return %arg0, %c0_i32, %c0_i32_0 : i32, i32, i32
  }
  func.func @transform_3(%arg0: i32) -> (i32, i32, i32, i32) {
    %c0_i32 = arith.constant 0 : i32
    %c0_i32_0 = arith.constant 0 : i32
    %c0_i32_1 = arith.constant 0 : i32
    %c0_i32_2 = arith.constant 0 : i32
    return %arg0, %c0_i32, %c0_i32_0, %c0_i32_1 : i32, i32, i32, i32
  }
  func.func @transform_4(%arg0: i32) -> (i32, i32, i32) {
    %c0_i32 = arith.constant 0 : i32
    %c0_i32_0 = arith.constant 0 : i32
    %c0_i32_1 = arith.constant 0 : i32
    return %arg0, %c0_i32, %c0_i32_0 : i32, i32, i32
  }
}

module attributes {stable_mosaic.version = 11 : i64} {
  func.func @oproj_mlp_kernel(%arg0: memref<16x64xf32, #tpu.memory_space<vmem>>, %arg1: memref<16x32xf32, #tpu.memory_space<vmem>>, %arg2: memref<64x32xf32, #tpu.memory_space<vmem>>, %arg3: memref<1x32xf32, #tpu.memory_space<vmem>>, %arg4: memref<32x64xf32, #tpu.memory_space<vmem>>, %arg5: memref<32x64xf32, #tpu.memory_space<vmem>>, %arg6: memref<64x32xf32, #tpu.memory_space<vmem>>, %arg7: memref<16x32xf32, #tpu.memory_space<vmem>>) attributes {dimension_semantics = [], scalar_prefetch = 0 : i64, scratch_operands = 0 : i64, tpu.core_type = #tpu.core_type<tc>} {
    %c0 = arith.constant 0 : index
    %c0_0 = arith.constant 0 : index
    %0 = vector.load %arg0[%c0, %c0_0] : memref<16x64xf32, #tpu.memory_space<vmem>>, vector<16x64xf32>
    %c0_1 = arith.constant 0 : index
    %c0_2 = arith.constant 0 : index
    %1 = vector.load %arg1[%c0_1, %c0_2] : memref<16x32xf32, #tpu.memory_space<vmem>>, vector<16x32xf32>
    %c0_3 = arith.constant 0 : index
    %c0_4 = arith.constant 0 : index
    %2 = vector.load %arg2[%c0_3, %c0_4] : memref<64x32xf32, #tpu.memory_space<vmem>>, vector<64x32xf32>
    %cst = arith.constant dense<0.000000e+00> : vector<16x32xf32>
    %3 = tpu.matmul %0, %2, %cst {dimension_numbers = #tpu.dot_dimension_numbers<[1], [0], [0], [1], [0, 0, 1, 1], [], []>} : vector<16x64xf32>, vector<64x32xf32>, vector<16x32xf32> -> vector<16x32xf32>
    %4 = arith.addf %1, %3 : vector<16x32xf32>
    %5 = arith.mulf %4, %4 : vector<16x32xf32>
    %cst_5 = arith.constant dense<0.000000e+00> : vector<16xf32>
    %6 = vector.multi_reduction <add>, %5, %cst_5 [1] : vector<16x32xf32> to vector<16xf32>
    %7 = vector.shape_cast %6 : vector<16xf32> to vector<16x1xf32>
    %cst_6 = arith.constant 3.200000e+01 : f32
    %8 = vector.broadcast %cst_6 : f32 to vector<16x1xf32>
    %9 = arith.divf %7, %8 : vector<16x1xf32>
    %cst_7 = arith.constant 9.99999997E-7 : f32
    %10 = vector.broadcast %cst_7 : f32 to vector<16x1xf32>
    %11 = arith.addf %9, %10 : vector<16x1xf32>
    %12 = math.rsqrt %11 : vector<16x1xf32>
    %13 = vector.broadcast %12 : vector<16x1xf32> to vector<16x32xf32>
    %14 = arith.mulf %4, %13 : vector<16x32xf32>
    %c0_8 = arith.constant 0 : index
    %c0_9 = arith.constant 0 : index
    %15 = vector.load %arg3[%c0_8, %c0_9] : memref<1x32xf32, #tpu.memory_space<vmem>>, vector<1x32xf32>
    %cst_10 = arith.constant 1.000000e+00 : f32
    %16 = vector.broadcast %cst_10 : f32 to vector<1x32xf32>
    %17 = arith.addf %16, %15 : vector<1x32xf32>
    %18 = vector.broadcast %17 : vector<1x32xf32> to vector<16x32xf32>
    %19 = arith.mulf %14, %18 : vector<16x32xf32>
    %c0_11 = arith.constant 0 : index
    %c0_12 = arith.constant 0 : index
    %20 = vector.load %arg4[%c0_11, %c0_12] : memref<32x64xf32, #tpu.memory_space<vmem>>, vector<32x64xf32>
    %cst_13 = arith.constant dense<0.000000e+00> : vector<16x64xf32>
    %21 = tpu.matmul %19, %20, %cst_13 {dimension_numbers = #tpu.dot_dimension_numbers<[1], [0], [0], [1], [0, 0, 1, 1], [], []>} : vector<16x32xf32>, vector<32x64xf32>, vector<16x64xf32> -> vector<16x64xf32>
    %c0_14 = arith.constant 0 : index
    %c0_15 = arith.constant 0 : index
    %22 = vector.load %arg5[%c0_14, %c0_15] : memref<32x64xf32, #tpu.memory_space<vmem>>, vector<32x64xf32>
    %cst_16 = arith.constant dense<0.000000e+00> : vector<16x64xf32>
    %23 = tpu.matmul %19, %22, %cst_16 {dimension_numbers = #tpu.dot_dimension_numbers<[1], [0], [0], [1], [0, 0, 1, 1], [], []>} : vector<16x32xf32>, vector<32x64xf32>, vector<16x64xf32> -> vector<16x64xf32>
    %cst_17 = arith.constant 5.000000e-01 : f32
    %24 = vector.broadcast %cst_17 : f32 to vector<16x64xf32>
    %25 = arith.mulf %24, %21 : vector<16x64xf32>
    %cst_18 = arith.constant 4.471500e-02 : f32
    %26 = vector.broadcast %cst_18 : f32 to vector<16x64xf32>
    %27 = arith.mulf %26, %21 : vector<16x64xf32>
    %28 = arith.mulf %27, %21 : vector<16x64xf32>
    %29 = arith.mulf %28, %21 : vector<16x64xf32>
    %30 = arith.addf %21, %29 : vector<16x64xf32>
    %cst_19 = arith.constant 0.797884583 : f32
    %31 = vector.broadcast %cst_19 : f32 to vector<16x64xf32>
    %32 = arith.mulf %31, %30 : vector<16x64xf32>
    %33 = math.tanh %32 : vector<16x64xf32>
    %cst_20 = arith.constant 1.000000e+00 : f32
    %34 = vector.broadcast %cst_20 : f32 to vector<16x64xf32>
    %35 = arith.addf %34, %33 : vector<16x64xf32>
    %36 = arith.mulf %25, %35 : vector<16x64xf32>
    %37 = arith.mulf %36, %23 : vector<16x64xf32>
    %c0_21 = arith.constant 0 : index
    %c0_22 = arith.constant 0 : index
    %38 = vector.load %arg6[%c0_21, %c0_22] : memref<64x32xf32, #tpu.memory_space<vmem>>, vector<64x32xf32>
    %cst_23 = arith.constant dense<0.000000e+00> : vector<16x32xf32>
    %39 = tpu.matmul %37, %38, %cst_23 {dimension_numbers = #tpu.dot_dimension_numbers<[1], [0], [0], [1], [0, 0, 1, 1], [], []>} : vector<16x64xf32>, vector<64x32xf32>, vector<16x32xf32> -> vector<16x32xf32>
    %40 = arith.addf %4, %39 : vector<16x32xf32>
    %c0_24 = arith.constant 0 : index
    %c0_25 = arith.constant 0 : index
    %41 = vector.load %arg7[%c0_24, %c0_25] : memref<16x32xf32, #tpu.memory_space<vmem>>, vector<16x32xf32>
    tpu.vector_store %arg7[%c0_24, %c0_25], %40 {strides = array<i32>} : memref<16x32xf32, #tpu.memory_space<vmem>>, vector<16x32xf32>,
    return
  }
}

module attributes {stable_mosaic.version = 11 : i64} {
  func.func @norm_matmul_kernel(%arg0: memref<16x32xf32, #tpu.memory_space<vmem>>, %arg1: memref<1x32xf32, #tpu.memory_space<vmem>>, %arg2: memref<32x128xf32, #tpu.memory_space<vmem>>, %arg3: memref<16x128xf32, #tpu.memory_space<vmem>>) attributes {dimension_semantics = [], scalar_prefetch = 0 : i64, scratch_operands = 0 : i64, tpu.core_type = #tpu.core_type<tc>} {
    %c0 = arith.constant 0 : index
    %c0_0 = arith.constant 0 : index
    %0 = vector.load %arg0[%c0, %c0_0] : memref<16x32xf32, #tpu.memory_space<vmem>>, vector<16x32xf32>
    %1 = arith.mulf %0, %0 : vector<16x32xf32>
    %cst = arith.constant dense<0.000000e+00> : vector<16xf32>
    %2 = vector.multi_reduction <add>, %1, %cst [1] : vector<16x32xf32> to vector<16xf32>
    %3 = vector.shape_cast %2 : vector<16xf32> to vector<16x1xf32>
    %cst_1 = arith.constant 3.200000e+01 : f32
    %4 = vector.broadcast %cst_1 : f32 to vector<16x1xf32>
    %5 = arith.divf %3, %4 : vector<16x1xf32>
    %cst_2 = arith.constant 9.99999997E-7 : f32
    %6 = vector.broadcast %cst_2 : f32 to vector<16x1xf32>
    %7 = arith.addf %5, %6 : vector<16x1xf32>
    %8 = math.rsqrt %7 : vector<16x1xf32>
    %9 = vector.broadcast %8 : vector<16x1xf32> to vector<16x32xf32>
    %10 = arith.mulf %0, %9 : vector<16x32xf32>
    %c0_3 = arith.constant 0 : index
    %c0_4 = arith.constant 0 : index
    %11 = vector.load %arg1[%c0_3, %c0_4] : memref<1x32xf32, #tpu.memory_space<vmem>>, vector<1x32xf32>
    %cst_5 = arith.constant 1.000000e+00 : f32
    %12 = vector.broadcast %cst_5 : f32 to vector<1x32xf32>
    %13 = arith.addf %12, %11 : vector<1x32xf32>
    %14 = vector.broadcast %13 : vector<1x32xf32> to vector<16x32xf32>
    %15 = arith.mulf %10, %14 : vector<16x32xf32>
    %c0_6 = arith.constant 0 : index
    %c0_7 = arith.constant 0 : index
    %16 = vector.load %arg2[%c0_6, %c0_7] : memref<32x128xf32, #tpu.memory_space<vmem>>, vector<32x128xf32>
    %cst_8 = arith.constant dense<0.000000e+00> : vector<16x128xf32>
    %17 = tpu.matmul %15, %16, %cst_8 {dimension_numbers = #tpu.dot_dimension_numbers<[1], [0], [0], [1], [0, 0, 1, 1], [], []>} : vector<16x32xf32>, vector<32x128xf32>, vector<16x128xf32> -> vector<16x128xf32>
    %c0_9 = arith.constant 0 : index
    %c0_10 = arith.constant 0 : index
    %18 = vector.load %arg3[%c0_9, %c0_10] : memref<16x128xf32, #tpu.memory_space<vmem>>, vector<16x128xf32>
    tpu.vector_store %arg3[%c0_9, %c0_10], %17 {strides = array<i32>} : memref<16x128xf32, #tpu.memory_space<vmem>>, vector<16x128xf32>,
    return
  }
}

</mosaic_0001>

<llo_original>
// kernel: gemma_forward.7
$region0: #{gemma_forward.7}
  #allocation0 [shape = 'u32[]', space=smem, size = 0x4, offset = 0x4, fixed_abs, tag = 'smem constant byte address 0x4 - core index']
  #allocation1 [shape = 'u32[144,128]{1,0:T(1,128)}', space=vmem, size = 0x12000, scoped, tag = 'internal scratch']
  %s0 = inlined_call_operand.vmem [shape: f32[16,32], index: 0, kind: input, shape index: {}]
  %s1 = inlined_call_operand.vmem [shape: f32[1,32], index: 1, kind: input, shape index: {}]
  %s2 = inlined_call_operand.vmem [shape: f32[32,128], index: 2, kind: input, shape index: {}]
  %s3 = inlined_call_operand.vmem [shape: f32[16,128], index: 3, kind: output, shape index: {}]
  %s4 = sld [smem:[#allocation0]]
  $region22: #{gemma_forward.7} parent=0
    _
  %s6 = ssub.s32 1, %s4
  %s7 = scalar_select 0, %s6, %s4
  // Predicated region
  $region2: #{gemma_forward.7} parent=0 // pred_check
    _
  $region3: #{gemma_forward.7} parent=0 // pred_check_branch
    %9 = sbr.rel (0) target = $region5
  $region4: #{gemma_forward.7} parent=0 // pred_region
    _
  $region5: #{gemma_forward.7} parent=0 // pred_fallthru
    _
  // Predicated region
  $region6: #{gemma_forward.7} parent=0 // pred_check
    _
  $region7: #{gemma_forward.7} parent=0 // pred_check_branch
    %11 = sbr.rel (0) target = $region9
  $region8: #{gemma_forward.7} parent=0 // pred_region
    _
  $region9: #{gemma_forward.7} parent=0 // pred_fallthru
    _
  // Predicated region
  $region10: #{gemma_forward.7} parent=0 // pred_check
    _
  $region11: #{gemma_forward.7} parent=0 // pred_check_branch
    %13 = sbr.rel (0) target = $region13
  $region12: #{gemma_forward.7} parent=0 // pred_region
    _
  $region13: #{gemma_forward.7} parent=0 // pred_fallthru
    _
  %v14 = vld [vmem:[%s0] sm:$0xff]
  %v15 = vld [vmem:[%s0 + $0x8] sm:$0xff]
  %v16 = vmul.f32 %v14, %v14
  %v17 = vmul.f32 %v15, %v15
  %vm18 = vcmask 261120
  %v19 = vsel %vm18, %v16, 0.0
  %20 = vadd.xlane.f32.xlu0 %v19
  %v21 = vpop.xlane.xlu0 %20
  %v22 = vsel %vm18, %v17, 0.0
  %23 = vadd.xlane.f32.xlu0 %v22
  %v24 = vpop.xlane.xlu0 %23
  %v25 = vrcp.pop 32.0
  %v26 = vmul.f32 %v21, %v25
  %v27 = vmul.f32 %v24, %v25
  %v28 = vadd.f32 %v26, 1e-06
  %v29 = vadd.f32 %v27, 1e-06
  %v30 = vrsqrt.pop %v28
  %v31 = vrsqrt.pop %v29
  %v32 = vmul.f32 %v14, %v30
  %v33 = vmul.f32 %v15, %v31
  %v34 = vld [vmem:[%s1] sm:$0x1]
  %v35 = vadd.f32 %v34, 1.0
  %v37 = vlaneseq
  %v38 = vshrl.u32 %v37, 7
  %v39 = vsub.s32 0, %v38
  %v40 = vrot.slane %v35, %v39
  %v42 = vmul.f32 %v32, %v40
  %v43 = vmul.f32 %v33, %v40
  %v44 = vld [vmem:[%s2] sm:$0xff]
  %v45 = vld [vmem:[%s2 + $0x8] sm:$0xff]
  %v46 = vld [vmem:[%s2 + $0x10] sm:$0xff]
  %v47 = vld [vmem:[%s2 + $0x18] sm:$0xff]
  %v49 = vsel %vm18, %v42, 0
  %v52 = vsel %vm18, %v43, 0
  %54 = vmatprep.subr.mxu0 0.0
  %55 = vmatpush1.msra.mxu0 0.0
  %56 = vmatprep.subr.mxu0 0.0
  %57 = vmatpush1.msra.mxu0 0.0
  %58 = vmatprep.subr.mxu0 0.0
  %59 = vmatpush1.msra.mxu0 0.0
  %60 = vmatprep.subr.mxu0 0.0
  %61 = vmatpush1.msra.mxu0 0.0
  %62 = vmatprep.subr.mxu0 0.0
  %63 = vmatpush1.msra.mxu0 0.0
  %64 = vmatprep.subr.mxu0 0.0
  %65 = vmatpush1.msra.mxu0 0.0
  %66 = vmatprep.subr.mxu0 0.0
  %67 = vmatpush1.msra.mxu0 0.0
  %68 = vmatprep.subr.mxu0 0.0
  %69 = vmatpush1.msra.mxu0 0.0
  %70 = vmatprep.subr.mxu0 0.0
  %71 = vmatpush1.msra.mxu0 0.0
  %72 = vmatprep.subr.mxu0 0.0
  %73 = vmatpush1.msra.mxu0 0.0
  %74 = vmatprep.subr.mxu0 0.0
  %75 = vmatpush1.msra.mxu0 0.0
  %76 = vmatprep.subr.mxu0 0.0
  %77 = vmatpush1.msra.mxu0 0.0
  %78 = vmatprep.subr.mxu0 0.0
  %79 = vmatpush1.msra.mxu0 %v47
  %80 = vmatprep.subr.mxu0 0.0
  %81 = vmatpush1.msra.mxu0 %v46
  %82 = vmatprep.subr.mxu0 0.0
  %83 = vmatpush1.msra.mxu0 %v45
  %84 = vmatprep.subr.mxu0 0.0
  %85 = vmatpush1.msra.mxu0 %v44
  %86 = vmatprep.subr.mxu0 0.0
  %87 = vmatpush2.msra.mxu0 0.0
  %88 = vmatprep.subr.mxu0 0.0
  %89 = vmatpush2.msra.mxu0 0.0
  %90 = vmatprep.subr.mxu0 0.0
  %91 = vmatpush2.msra.mxu0 0.0
  %92 = vmatprep.subr.mxu0 0.0
  %93 = vmatpush2.msra.mxu0 0.0
  %94 = vmatprep.subr.mxu0 0.0
  %95 = vmatpush2.msra.mxu0 0.0
  %96 = vmatprep.subr.mxu0 0.0
  %97 = vmatpush2.msra.mxu0 0.0
  %98 = vmatprep.subr.mxu0 0.0
  %99 = vmatpush2.msra.mxu0 0.0
  %100 = vmatprep.subr.mxu0 0.0
  %101 = vmatpush2.msra.mxu0 0.0
  %102 = vmatprep.subr.mxu0 0.0
  %103 = vmatpush2.msra.mxu0 0.0
  %104 = vmatprep.subr.mxu0 0.0
  %105 = vmatpush2.msra.mxu0 0.0
  %106 = vmatprep.subr.mxu0 0.0
  %107 = vmatpush2.msra.mxu0 0.0
  %108 = vmatprep.subr.mxu0 0.0
  %109 = vmatpush2.msra.mxu0 0.0
  %110 = vmatprep.subr.mxu0 0.0
  %111 = vmatpush2.msra.mxu0 0.0
  %112 = vmatprep.subr.mxu0 0.0
  %113 = vmatpush2.msra.mxu0 0.0
  %114 = vmatprep.subr.mxu0 0.0
  %115 = vmatpush2.msra.mxu0 0.0
  %116 = vmatprep.subr.mxu0 0.0
  %117 = vmatpush2.msra.mxu0 0.0
  %118 = vmatprep.mubr.f32.mxu0 0.0
  %119 = vmatmul.mubr.f32.gmra.mxu0 %v49
  %v120 = vpop.f32.mrf.mxu0
  %v121 = vadd.f32 0.0, %v120
  %v122 = vpop.f32.mrf.mxu0
  %123 = vmatprep.mubr.f32.mxu0 0.0
  %124 = vmatmul.mubr.f32.gmra.mxu0 %v52
  %v125 = vpop.f32.mrf.mxu0
  %v126 = vadd.f32 0.0, %v125
  %v127 = vpop.f32.mrf.mxu0
  %128 = vdwg.mxu0
  %129 = vst [vmem:[%s3] sm:$0xff] %v121
  %130 = vst [vmem:[%s3 + $0x8] sm:$0xff] %v126
  // Predicated region
  $region14: #{gemma_forward.7} parent=0 // pred_check
    _
  $region15: #{gemma_forward.7} parent=0 // pred_check_branch
    %132 = sbr.rel (0) target = $region17
  $region16: #{gemma_forward.7} parent=0 // pred_region
    _
  $region17: #{gemma_forward.7} parent=0 // pred_fallthru
    _
  // Predicated region
  $region18: #{gemma_forward.7} parent=0 // pred_check
    _
  $region19: #{gemma_forward.7} parent=0 // pred_check_branch
    %134 = sbr.rel (0) target = $region21
  $region20: #{gemma_forward.7} parent=0 // pred_region
    _
  $region21: #{gemma_forward.7} parent=0 // pred_fallthru
    _

// kernel: gemma_forward.8
$region0: #{gemma_forward.8}
  #allocation0 [shape = 'u32[]', space=smem, size = 0x4, offset = 0x4, fixed_abs, tag = 'smem constant byte address 0x4 - core index']
  #allocation1 [shape = 'u32[144,128]{1,0:T(1,128)}', space=vmem, size = 0x12000, scoped, tag = 'internal scratch']
  %s0 = inlined_call_operand.vmem [shape: f32[2,8,128], index: 0, kind: input, shape index: {}]
  %s1 = inlined_call_operand.vmem [shape: f32[2,8,16], index: 1, kind: input, shape index: {}]
  %s2 = inlined_call_operand.vmem [shape: f32[2,8,16], index: 2, kind: input, shape index: {}]
  %s3 = inlined_call_operand.vmem [shape: f32[2,1,8,8], index: 3, kind: input, shape index: {}]
  %s4 = inlined_call_operand.vmem [shape: f32[2,8,64], index: 4, kind: output, shape index: {}]
  %s5 = sld [smem:[#allocation0]]
  $region49: #{gemma_forward.8} parent=0
    _
  %s7 = ssub.s32 1, %s5
  %s8 = scalar_select 0, %s7, %s5
  loop: start=0, step=1, limit=4
  $region2: #{gemma_forward.8} parent=0 // loop_pre_header
    _
  $region3: #{gemma_forward.8} parent=0 // loop_header
    %s10 = sphi 0, %s14
    %p11 = scmp.ge.s32.totalorder %s10, 4
    %s20 = sphi 0, %s22
    %s23 = sphi 0, %s20
    %s24 = sphi 0, %s23
    %s40 = sphi 0, %s24
    %s46 = sphi 0, %s48
    %s49 = sphi 0, %s46
    %s50 = sphi 0, %s49
    %s66 = sphi 0, %s50
    %s72 = sphi 0, %s74
    %s75 = sphi 0, %s72
    %s76 = sphi 0, %s75
    %s92 = sphi 0, %s76
    %s98 = sphi 0, %s100
    %s101 = sphi 0, %s98
    %s102 = sphi 0, %s101
    %s118 = sphi 0, %s102
    %s124 = sphi 0, %s126
    %s127 = sphi 0, %s124
    %s128 = sphi 0, %s127
    %s144 = sphi 0, %s128
  $region4: #{gemma_forward.8} parent=0 // loop_header_branch
    %13 = sbr.rel (%p11) target = $region8
  $region5: #{gemma_forward.8} parent=0 // loop_body
    %s15 = ssub.s32 %s10, 1
    %s16 = ssub.s32 %s10, 2
    %s17 = sadd.s32 %s10, 1
    %s18 = ssub.s32 %s10, %s17
    %p19 = scmp.eq.s32.totalorder %s18, 0
    %s21 = sadd.s32 %s20, 1
    %s22 = scalar_select %p19, %s20, %s21
    %p25 = pneg %p19
    %p26 = scmp.eq.s32.totalorder %s10, 1
    %p27 = por %p25, %p26
    %p28 = scmp.ne.s32.totalorder %s20, %s23
    %p29 = scmp.eq.s32.totalorder %s10, 0
    %p30 = por %p28, %p29
    %p31 = scmp.ne.s32.totalorder %s20, %s23
    %p32 = scmp.eq.s32.totalorder %s15, 1
    %p33 = por %p31, %p32
    %p34 = scmp.ne.s32.totalorder %s23, %s24
    %p35 = scmp.eq.s32.totalorder %s15, 0
    %p36 = por %p34, %p35
    %p37 = scmp.ne.s32.totalorder %s23, %s24
    %p38 = scmp.eq.s32.totalorder %s16, 1
    %p39 = por %p37, %p38
    %p41 = scmp.ne.s32.totalorder %s24, %s40
    %p42 = scmp.eq.s32.totalorder %s16, 0
    %p43 = por %p41, %p42
    %s44 = ssub.s32 %s10, %s17
    %p45 = scmp.eq.s32.totalorder %s44, 0
    %s47 = sadd.s32 %s46, 1
    %s48 = scalar_select %p45, %s46, %s47
    %p51 = pneg %p45
    %p52 = scmp.eq.s32.totalorder %s10, 1
    %p53 = por %p51, %p52
    %p54 = scmp.ne.s32.totalorder %s46, %s49
    %p55 = scmp.eq.s32.totalorder %s10, 0
    %p56 = por %p54, %p55
    %p57 = scmp.ne.s32.totalorder %s46, %s49
    %p58 = scmp.eq.s32.totalorder %s15, 1
    %p59 = por %p57, %p58
    %p60 = scmp.ne.s32.totalorder %s49, %s50
    %p61 = scmp.eq.s32.totalorder %s15, 0
    %p62 = por %p60, %p61
    %p63 = scmp.ne.s32.totalorder %s49, %s50
    %p64 = scmp.eq.s32.totalorder %s16, 1
    %p65 = por %p63, %p64
    %p67 = scmp.ne.s32.totalorder %s50, %s66
    %p68 = scmp.eq.s32.totalorder %s16, 0
    %p69 = por %p67, %p68
    %s70 = ssub.s32 %s10, %s17
    %p71 = scmp.eq.s32.totalorder %s70, 0
    %s73 = sadd.s32 %s72, 1
    %s74 = scalar_select %p71, %s72, %s73
    %p77 = pneg %p71
    %p78 = scmp.eq.s32.totalorder %s10, 1
    %p79 = por %p77, %p78
    %p80 = scmp.ne.s32.totalorder %s72, %s75
    %p81 = scmp.eq.s32.totalorder %s10, 0
    %p82 = por %p80, %p81
    %p83 = scmp.ne.s32.totalorder %s72, %s75
    %p84 = scmp.eq.s32.totalorder %s15, 1
    %p85 = por %p83, %p84
    %p86 = scmp.ne.s32.totalorder %s75, %s76
    %p87 = scmp.eq.s32.totalorder %s15, 0
    %p88 = por %p86, %p87
    %p89 = scmp.ne.s32.totalorder %s75, %s76
    %p90 = scmp.eq.s32.totalorder %s16, 1
    %p91 = por %p89, %p90
    %p93 = scmp.ne.s32.totalorder %s76, %s92
    %p94 = scmp.eq.s32.totalorder %s16, 0
    %p95 = por %p93, %p94
    %s96 = ssub.s32 %s10, %s17
    %p97 = scmp.eq.s32.totalorder %s96, 0
    %s99 = sadd.s32 %s98, 1
    %s100 = scalar_select %p97, %s98, %s99
    %p103 = pneg %p97
    %p104 = scmp.eq.s32.totalorder %s10, 1
    %p105 = por %p103, %p104
    %p106 = scmp.ne.s32.totalorder %s98, %s101
    %p107 = scmp.eq.s32.totalorder %s10, 0
    %p108 = por %p106, %p107
    %p109 = scmp.ne.s32.totalorder %s98, %s101
    %p110 = scmp.eq.s32.totalorder %s15, 1
    %p111 = por %p109, %p110
    %p112 = scmp.ne.s32.totalorder %s101, %s102
    %p113 = scmp.eq.s32.totalorder %s15, 0
    %p114 = por %p112, %p113
    %p115 = scmp.ne.s32.totalorder %s101, %s102
    %p116 = scmp.eq.s32.totalorder %s16, 1
    %p117 = por %p115, %p116
    %p119 = scmp.ne.s32.totalorder %s102, %s118
    %p120 = scmp.eq.s32.totalorder %s16, 0
    %p121 = por %p119, %p120
    %s122 = ssub.s32 %s10, %s17
    %p123 = scmp.eq.s32.totalorder %s122, 0
    %s125 = sadd.s32 %s124, 1
    %s126 = scalar_select %p123, %s124, %s125
    %p129 = pneg %p123
    %p130 = scmp.eq.s32.totalorder %s10, 1
    %p131 = por %p129, %p130
    %p132 = scmp.ne.s32.totalorder %s124, %s127
    %p133 = scmp.eq.s32.totalorder %s10, 0
    %p134 = por %p132, %p133
    %p135 = scmp.ne.s32.totalorder %s124, %s127
    %p136 = scmp.eq.s32.totalorder %s15, 1
    %p137 = por %p135, %p136
    %p138 = scmp.ne.s32.totalorder %s127, %s128
    %p139 = scmp.eq.s32.totalorder %s15, 0
    %p140 = por %p138, %p139
    %p141 = scmp.ne.s32.totalorder %s127, %s128
    %p142 = scmp.eq.s32.totalorder %s16, 1
    %p143 = por %p141, %p142
    %p145 = scmp.ne.s32.totalorder %s128, %s144
    %p146 = scmp.eq.s32.totalorder %s16, 0
    %p147 = por %p145, %p146
    %p148 = scmp.le.s32.totalorder 1, %s10
    %p149 = scmp.lt.s32.totalorder %s10, 3
    %p150 = pnand %p148, %p149
    %p151 = pneg %p150
    // Predicated region
    $region9: #{gemma_forward.8} parent=5 // pred_check
      _
    $region10: #{gemma_forward.8} parent=5 // pred_check_branch
      %153 = sbr.rel (%p150) target = $region12
    $region11: #{gemma_forward.8} parent=5 // pred_region
      %s154 = ssub.s32 %s10, 1
    $region12: #{gemma_forward.8} parent=5 // pred_fallthru
      _
    %p155 = scmp.lt.s32.totalorder %s10, 2
    // Predicated region
    $region13: #{gemma_forward.8} parent=5 // pred_check
      %p156 = pneg %p155
    $region14: #{gemma_forward.8} parent=5 // pred_check_branch
      %158 = sbr.rel (%p156) target = $region16
    $region15: #{gemma_forward.8} parent=5 // pred_region
      // Predicated region
      $region17: #{gemma_forward.8} parent=15 // pred_check
        %p159 = pneg %p30
      $region18: #{gemma_forward.8} parent=15 // pred_check_branch
        %161 = sbr.rel (%p159) target = $region20
      $region19: #{gemma_forward.8} parent=15 // pred_region
        %p162 = scmp.lt.s32.totalorder %s10, 1
        %s163 = scalar_select %p162, %s10, 1
        %s164 = smul.addr %s163, 8
        %s165 = scalar_lea.vmem %s0, %s164
      $region20: #{gemma_forward.8} parent=15 // pred_fallthru
        _
      // Predicated region
      $region21: #{gemma_forward.8} parent=15 // pred_check
        %p166 = pneg %p56
      $region22: #{gemma_forward.8} parent=15 // pred_check_branch
        %168 = sbr.rel (%p166) target = $region24
      $region23: #{gemma_forward.8} parent=15 // pred_region
        %p169 = scmp.lt.s32.totalorder %s10, 1
        %s170 = scalar_select %p169, %s10, 1
        %s171 = smul.addr %s170, 8
        %s172 = scalar_lea.vmem %s1, %s171
      $region24: #{gemma_forward.8} parent=15 // pred_fallthru
        _
      // Predicated region
      $region25: #{gemma_forward.8} parent=15 // pred_check
        %p173 = pneg %p82
      $region26: #{gemma_forward.8} parent=15 // pred_check_branch
        %175 = sbr.rel (%p173) target = $region28
      $region27: #{gemma_forward.8} parent=15 // pred_region
        %p176 = scmp.lt.s32.totalorder %s10, 1
        %s177 = scalar_select %p176, %s10, 1
        %s178 = smul.addr %s177, 8
        %s179 = scalar_lea.vmem %s2, %s178
      $region28: #{gemma_forward.8} parent=15 // pred_fallthru
        _
      // Predicated region
      $region29: #{gemma_forward.8} parent=15 // pred_check
        %p180 = pneg %p108
      $region30: #{gemma_forward.8} parent=15 // pred_check_branch
        %182 = sbr.rel (%p180) target = $region32
      $region31: #{gemma_forward.8} parent=15 // pred_region
        %p183 = scmp.lt.s32.totalorder %s10, 1
        %s184 = scalar_select %p183, %s10, 1
        %s185 = smul.addr %s184, 8
        %s186 = scalar_lea.vmem %s3, %s185
      $region32: #{gemma_forward.8} parent=15 // pred_fallthru
        _
    $region16: #{gemma_forward.8} parent=5 // pred_fallthru
      _
    %p187 = scmp.le.s32.totalorder 1, %s10
    %p188 = scmp.lt.s32.totalorder %s10, 3
    %p189 = pnand %p187, %p188
    %p190 = pneg %p189
    // Predicated region
    $region33: #{gemma_forward.8} parent=5 // pred_check
      _
    $region34: #{gemma_forward.8} parent=5 // pred_check_branch
      %192 = sbr.rel (%p189) target = $region36
    $region35: #{gemma_forward.8} parent=5 // pred_region
      %s193 = ssub.s32 %s10, 1
      %p194 = scmp.lt.s32.totalorder %s15, 1
      %s195 = scalar_select %p194, %s15, 1
      %s196 = smul.addr %s195, 8
      %s197 = scalar_lea.vmem %s0, %s196
      %p198 = pneg %p36
      %p199 = pneg %p33
      %p200 = scmp.lt.s32.totalorder %s15, 1
      %s201 = scalar_select %p200, %s15, 1
      %s202 = smul.addr %s201, 8
      %s203 = scalar_lea.vmem %s1, %s202
      %p204 = pneg %p62
      %p205 = pneg %p59
      %p206 = scmp.lt.s32.totalorder %s15, 1
      %s207 = scalar_select %p206, %s15, 1
      %s208 = smul.addr %s207, 8
      %s209 = scalar_lea.vmem %s2, %s208
      %p210 = pneg %p88
      %p211 = pneg %p85
      %p212 = scmp.lt.s32.totalorder %s15, 1
      %s213 = scalar_select %p212, %s15, 1
      %s214 = smul.addr %s213, 8
      %s215 = scalar_lea.vmem %s3, %s214
      %p216 = pneg %p114
      %p217 = pneg %p111
      %p218 = pneg %p140
      %p219 = pneg %p137
      %p220 = scmp.lt.s32.totalorder %s15, 1
      %s221 = scalar_select %p220, %s15, 1
      %s222 = smul.addr %s221, 8
      %s223 = scalar_lea.vmem %s4, %s222
      %p224 = scmp.lt.s32.totalorder %s15, 1
      %s225 = scalar_select %p224, %s15, 1
      %s226 = smul.addr %s225, 8
      %s227 = scalar_lea.vmem %s0, %s226
      %p228 = scmp.lt.s32.totalorder %s15, 1
      %s229 = scalar_select %p228, %s15, 1
      %s230 = smul.addr %s229, 8
      %s231 = scalar_lea.vmem %s1, %s230
      %p232 = scmp.lt.s32.totalorder %s15, 1
      %s233 = scalar_select %p232, %s15, 1
      %s234 = smul.addr %s233, 8
      %s235 = scalar_lea.vmem %s2, %s234
      %p236 = scmp.lt.s32.totalorder %s15, 1
      %s237 = scalar_select %p236, %s15, 1
      %s238 = smul.addr %s237, 8
      %s239 = scalar_lea.vmem %s3, %s238
      %p240 = scmp.lt.s32.totalorder %s15, 1
      %s241 = scalar_select %p240, %s15, 1
      %s242 = smul.addr %s241, 8
      %s243 = scalar_lea.vmem %s4, %s242
      %v244 = vld [vmem:[%s227] sm:$0xff]
      %v245 = vld [vmem:[%s231] sm:$0xff]
      %v246 = vld [vmem:[%s235] sm:$0xff]
      %v247 = vld [vmem:[%s239] sm:$0xff]
      %249 = vrot.lane.b32.xlu0 %v244, 56
      %v250 = vpop.permute.xlu0 %249
      %252 = vrot.lane.b32.xlu0 %v244, 72
      %v253 = vpop.permute.xlu0 %252
      %vm255 = vcmask 64512
      %v256 = vsel %vm255, %v250, %v253
      %258 = vrot.lane.b32.xlu0 %v245, 64
      %v259 = vpop.permute.xlu0 %258
      %v261 = vmul.f32 %v244, %v259
      %v262 = vmul.f32 %v256, %v246
      %264 = vrot.lane.b32.xlu0 %v262, 64
      %v265 = vpop.permute.xlu0 %264
      %v267 = vadd.f32 %v261, %v265
      %268 = vrot.lane.b32.xlu0 %v244, 120
      %v269 = vpop.permute.xlu0 %268
      %271 = vrot.lane.b32.xlu0 %v244, 8
      %v272 = vpop.permute.xlu0 %271
      %v274 = vsel %vm255, %v269, %v272
      %v275 = vmul.f32 %v244, %v245
      %v276 = vmul.f32 %v274, %v246
      %v277 = vadd.f32 %v275, %v276
      %278 = vrot.lane.b32.xlu0 %v244, 104
      %v279 = vpop.permute.xlu0 %278
      %v281 = vsel %vm255, %v279, %v269
      %282 = vrot.lane.b32.xlu0 %v245, 16
      %v283 = vpop.permute.xlu0 %282
      %v285 = vmul.f32 %v244, %v283
      %v286 = vmul.f32 %v281, %v246
      %288 = vrot.lane.b32.xlu0 %v286, 16
      %v289 = vpop.permute.xlu0 %288
      %v291 = vadd.f32 %v285, %v289
      %293 = vrot.lane.b32.xlu0 %v291, 112
      %v294 = vpop.permute.xlu0 %293
      %296 = vrot.lane.b32.xlu0 %v267, 64
      %v297 = vpop.permute.xlu0 %296
      %vm298 = vcmask 130048
      %v300 = vsel %vm298, %v277, 0
      %v302 = vsel %vm298, %v294, 0
      %v304 = vsel %vm298, %v297, 0
      %306 = vmatprep.subr.mxu0 0.0
      %307 = vmatpush1.xpose.msra.mxu0 0.0
      %308 = vmatprep.subr.mxu0 0.0
      %309 = vmatpush1.xpose.msra.mxu0 0.0
      %310 = vmatprep.subr.mxu0 0.0
      %311 = vmatpush1.xpose.msra.mxu0 0.0
      %312 = vmatprep.subr.mxu0 0.0
      %313 = vmatpush1.xpose.msra.mxu0 0.0
      %314 = vmatprep.subr.mxu0 0.0
      %315 = vmatpush1.xpose.msra.mxu0 0.0
      %316 = vmatprep.subr.mxu0 0.0
      %317 = vmatpush1.xpose.msra.mxu0 0.0
      %318 = vmatprep.subr.mxu0 0.0
      %319 = vmatpush1.xpose.msra.mxu0 0.0
      %320 = vmatprep.subr.mxu0 0.0
      %321 = vmatpush1.xpose.msra.mxu0 0.0
      %322 = vmatprep.subr.mxu0 0.0
      %323 = vmatpush1.xpose.msra.mxu0 0.0
      %324 = vmatprep.subr.mxu0 0.0
      %325 = vmatpush1.xpose.msra.mxu0 0.0
      %326 = vmatprep.subr.mxu0 0.0
      %327 = vmatpush1.xpose.msra.mxu0 0.0
      %328 = vmatprep.subr.mxu0 0.0
      %329 = vmatpush1.xpose.msra.mxu0 0.0
      %330 = vmatprep.subr.mxu0 0.0
      %331 = vmatpush1.xpose.msra.mxu0 0.0
      %332 = vmatprep.subr.mxu0 0.0
      %333 = vmatpush1.xpose.msra.mxu0 0.0
      %334 = vmatprep.subr.mxu0 0.0
      %335 = vmatpush1.xpose.msra.mxu0 0.0
      %336 = vmatprep.subr.mxu0 0.0
      %337 = vmatpush1.xpose.msra.mxu0 %v304
      %338 = vmatprep.subr.mxu0 0.0
      %339 = vmatpush2.xpose.msra.mxu0 0.0
      %340 = vmatprep.subr.mxu0 0.0
      %341 = vmatpush2.xpose.msra.mxu0 0.0
      %342 = vmatprep.subr.mxu0 0.0
      %343 = vmatpush2.xpose.msra.mxu0 0.0
      %344 = vmatprep.subr.mxu0 0.0
      %345 = vmatpush2.xpose.msra.mxu0 0.0
      %346 = vmatprep.subr.mxu0 0.0
      %347 = vmatpush2.xpose.msra.mxu0 0.0
      %348 = vmatprep.subr.mxu0 0.0
      %349 = vmatpush2.xpose.msra.mxu0 0.0
      %350 = vmatprep.subr.mxu0 0.0
      %351 = vmatpush2.xpose.msra.mxu0 0.0
      %352 = vmatprep.subr.mxu0 0.0
      %353 = vmatpush2.xpose.msra.mxu0 0.0
      %354 = vmatprep.subr.mxu0 0.0
      %355 = vmatpush2.xpose.msra.mxu0 0.0
      %356 = vmatprep.subr.mxu0 0.0
      %357 = vmatpush2.xpose.msra.mxu0 0.0
      %358 = vmatprep.subr.mxu0 0.0
      %359 = vmatpush2.xpose.msra.mxu0 0.0
      %360 = vmatprep.subr.mxu0 0.0
      %361 = vmatpush2.xpose.msra.mxu0 0.0
      %362 = vmatprep.subr.mxu0 0.0
      %363 = vmatpush2.xpose.msra.mxu0 0.0
      %364 = vmatprep.subr.mxu0 0.0
      %365 = vmatpush2.xpose.msra.mxu0 0.0
      %366 = vmatprep.subr.mxu0 0.0
      %367 = vmatpush2.xpose.msra.mxu0 0.0
      %368 = vmatprep.subr.mxu0 0.0
      %369 = vmatpush2.xpose.msra.mxu0 0.0
      %370 = vmatprep.mubr.f32.mxu0 0.0
      %371 = vmatmul.mubr.f32.gmra.mxu0 %v300
      %v372 = vpop.f32.mrf.mxu0
      %v373 = vadd.f32 0.0, %v372
      %v374 = vpop.f32.mrf.mxu0
      %375 = vmatprep.mubr.f32.mxu0 0.0
      %376 = vmatmul.mubr.f32.gmra.mxu0 %v302
      %v377 = vpop.f32.mrf.mxu0
      %v378 = vadd.f32 0.0, %v377
      %v379 = vpop.f32.mrf.mxu0
      %380 = vdwg.mxu0
      %v381 = vmul.f32 %v373, 0.25
      %v382 = vmul.f32 %v378, 0.25
      %v383 = vadd.f32 %v381, %v247
      %v384 = vadd.f32 %v382, %v247
      %v385 = vsel %vm255, %v383, -inf
      %386 = vmax.xlane.f32.xlu0 %v385
      %v387 = vpop.xlane.xlu0 %386
      %v388 = vsel %vm255, %v384, -inf
      %389 = vmax.xlane.f32.xlu0 %v388
      %v390 = vpop.xlane.xlu0 %389
      %v391 = vsub.f32 %v383, %v387
      %v392 = vsub.f32 %v384, %v390
      %v393 = vmul.f32 %v391, 1.442695
      %v394 = vpow.pop %v393
      %v395 = vmul.f32 %v392, 1.442695
      %v396 = vpow.pop %v395
      %v397 = vsel %vm255, %v394, 0.0
      %398 = vadd.xlane.f32.xlu0 %v397
      %v399 = vpop.xlane.xlu0 %398
      %v400 = vsel %vm255, %v396, 0.0
      %401 = vadd.xlane.f32.xlu0 %v400
      %v402 = vpop.xlane.xlu0 %401
      %v403 = vrcp.pop %v399
      %v404 = vrcp.pop %v402
      %v405 = vmul.f32 %v394, %v403
      %v406 = vmul.f32 %v396, %v404
      %407 = vrot.lane.b32.xlu0 %v244, 32
      %v408 = vpop.permute.xlu0 %407
      %v411 = vsel %vm255, %v405, 0
      %v414 = vsel %vm255, %v406, 0
      %416 = vmatprep.subr.mxu0 0.0
      %417 = vmatpush1.msra.mxu0 0.0
      %418 = vmatprep.subr.mxu0 0.0
      %419 = vmatpush1.msra.mxu0 0.0
      %420 = vmatprep.subr.mxu0 0.0
      %421 = vmatpush1.msra.mxu0 0.0
      %422 = vmatprep.subr.mxu0 0.0
      %423 = vmatpush1.msra.mxu0 0.0
      %424 = vmatprep.subr.mxu0 0.0
      %425 = vmatpush1.msra.mxu0 0.0
      %426 = vmatprep.subr.mxu0 0.0
      %427 = vmatpush1.msra.mxu0 0.0
      %428 = vmatprep.subr.mxu0 0.0
      %429 = vmatpush1.msra.mxu0 0.0
      %430 = vmatprep.subr.mxu0 0.0
      %431 = vmatpush1.msra.mxu0 0.0
      %432 = vmatprep.subr.mxu0 0.0
      %433 = vmatpush1.msra.mxu0 0.0
      %434 = vmatprep.subr.mxu0 0.0
      %435 = vmatpush1.msra.mxu0 0.0
      %436 = vmatprep.subr.mxu0 0.0
      %437 = vmatpush1.msra.mxu0 0.0
      %438 = vmatprep.subr.mxu0 0.0
      %439 = vmatpush1.msra.mxu0 0.0
      %440 = vmatprep.subr.mxu0 0.0
      %441 = vmatpush1.msra.mxu0 0.0
      %442 = vmatprep.subr.mxu0 0.0
      %443 = vmatpush1.msra.mxu0 0.0
      %444 = vmatprep.subr.mxu0 0.0
      %445 = vmatpush1.msra.mxu0 0.0
      %446 = vmatprep.subr.mxu0 0.0
      %447 = vmatpush1.msra.mxu0 %v408
      %448 = vmatprep.subr.mxu0 0.0
      %449 = vmatpush2.msra.mxu0 0.0
      %450 = vmatprep.subr.mxu0 0.0
      %451 = vmatpush2.msra.mxu0 0.0
      %452 = vmatprep.subr.mxu0 0.0
      %453 = vmatpush2.msra.mxu0 0.0
      %454 = vmatprep.subr.mxu0 0.0
      %455 = vmatpush2.msra.mxu0 0.0
      %456 = vmatprep.subr.mxu0 0.0
      %457 = vmatpush2.msra.mxu0 0.0
      %458 = vmatprep.subr.mxu0 0.0
      %459 = vmatpush2.msra.mxu0 0.0
      %460 = vmatprep.subr.mxu0 0.0
      %461 = vmatpush2.msra.mxu0 0.0
      %462 = vmatprep.subr.mxu0 0.0
      %463 = vmatpush2.msra.mxu0 0.0
      %464 = vmatprep.subr.mxu0 0.0
      %465 = vmatpush2.msra.mxu0 0.0
      %466 = vmatprep.subr.mxu0 0.0
      %467 = vmatpush2.msra.mxu0 0.0
      %468 = vmatprep.subr.mxu0 0.0
      %469 = vmatpush2.msra.mxu0 0.0
      %470 = vmatprep.subr.mxu0 0.0
      %471 = vmatpush2.msra.mxu0 0.0
      %472 = vmatprep.subr.mxu0 0.0
      %473 = vmatpush2.msra.mxu0 0.0
      %474 = vmatprep.subr.mxu0 0.0
      %475 = vmatpush2.msra.mxu0 0.0
      %476 = vmatprep.subr.mxu0 0.0
      %477 = vmatpush2.msra.mxu0 0.0
      %478 = vmatprep.subr.mxu0 0.0
      %479 = vmatpush2.msra.mxu0 0.0
      %480 = vmatprep.mubr.f32.mxu0 0.0
      %481 = vmatmul.mubr.f32.gmra.mxu0 %v411
      %v482 = vpop.f32.mrf.mxu0
      %v483 = vadd.f32 0.0, %v482
      %v484 = vpop.f32.mrf.mxu0
      %485 = vmatprep.mubr.f32.mxu0 0.0
      %486 = vmatmul.mubr.f32.gmra.mxu0 %v414
      %v487 = vpop.f32.mrf.mxu0
      %v488 = vadd.f32 0.0, %v487
      %v489 = vpop.f32.mrf.mxu0
      %490 = vdwg.mxu0
      %491 = vrot.lane.b32.xlu0 %v244, 40
      %v492 = vpop.permute.xlu0 %491
      %v494 = vsel %vm255, %v492, %v250
      %495 = vrot.lane.b32.xlu0 %v245, 80
      %v496 = vpop.permute.xlu0 %495
      %v498 = vmul.f32 %v244, %v496
      %v499 = vmul.f32 %v494, %v246
      %501 = vrot.lane.b32.xlu0 %v499, 80
      %v502 = vpop.permute.xlu0 %501
      %v504 = vadd.f32 %v498, %v502
      %505 = vrot.lane.b32.xlu0 %v244, 88
      %v506 = vpop.permute.xlu0 %505
      %v508 = vsel %vm255, %v506, %v279
      %509 = vrot.lane.b32.xlu0 %v245, 32
      %v510 = vpop.permute.xlu0 %509
      %v512 = vmul.f32 %v244, %v510
      %v513 = vmul.f32 %v508, %v246
      %515 = vrot.lane.b32.xlu0 %v513, 32
      %v516 = vpop.permute.xlu0 %515
      %v518 = vadd.f32 %v512, %v516
      %v519 = vsel %vm255, %v253, %v506
      %520 = vrot.lane.b32.xlu0 %v245, 48
      %v521 = vpop.permute.xlu0 %520
      %v523 = vmul.f32 %v244, %v521
      %v524 = vmul.f32 %v519, %v246
      %526 = vrot.lane.b32.xlu0 %v524, 48
      %v527 = vpop.permute.xlu0 %526
      %v529 = vadd.f32 %v523, %v527
      %531 = vrot.lane.b32.xlu0 %v529, 112
      %v532 = vpop.permute.xlu0 %531
      %534 = vrot.lane.b32.xlu0 %v518, 96
      %v535 = vpop.permute.xlu0 %534
      %536 = vrot.lane.b32.xlu0 %v532, 96
      %v537 = vpop.permute.xlu0 %536
      %539 = vrot.lane.b32.xlu0 %v504, 48
      %v540 = vpop.permute.xlu0 %539
      %v541 = vsel %vm298, %v535, 0
      %v543 = vsel %vm298, %v537, 0
      %v545 = vsel %vm298, %v540, 0
      %547 = vmatprep.subr.mxu0 0.0
      %548 = vmatpush1.xpose.msra.mxu0 0.0
      %549 = vmatprep.subr.mxu0 0.0
      %550 = vmatpush1.xpose.msra.mxu0 0.0
      %551 = vmatprep.subr.mxu0 0.0
      %552 = vmatpush1.xpose.msra.mxu0 0.0
      %553 = vmatprep.subr.mxu0 0.0
      %554 = vmatpush1.xpose.msra.mxu0 0.0
      %555 = vmatprep.subr.mxu0 0.0
      %556 = vmatpush1.xpose.msra.mxu0 0.0
      %557 = vmatprep.subr.mxu0 0.0
      %558 = vmatpush1.xpose.msra.mxu0 0.0
      %559 = vmatprep.subr.mxu0 0.0
      %560 = vmatpush1.xpose.msra.mxu0 0.0
      %561 = vmatprep.subr.mxu0 0.0
      %562 = vmatpush1.xpose.msra.mxu0 0.0
      %563 = vmatprep.subr.mxu0 0.0
      %564 = vmatpush1.xpose.msra.mxu0 0.0
      %565 = vmatprep.subr.mxu0 0.0
      %566 = vmatpush1.xpose.msra.mxu0 0.0
      %567 = vmatprep.subr.mxu0 0.0
      %568 = vmatpush1.xpose.msra.mxu0 0.0
      %569 = vmatprep.subr.mxu0 0.0
      %570 = vmatpush1.xpose.msra.mxu0 0.0
      %571 = vmatprep.subr.mxu0 0.0
      %572 = vmatpush1.xpose.msra.mxu0 0.0
      %573 = vmatprep.subr.mxu0 0.0
      %574 = vmatpush1.xpose.msra.mxu0 0.0
      %575 = vmatprep.subr.mxu0 0.0
      %576 = vmatpush1.xpose.msra.mxu0 0.0
      %577 = vmatprep.subr.mxu0 0.0
      %578 = vmatpush1.xpose.msra.mxu0 %v545
      %579 = vmatprep.subr.mxu0 0.0
      %580 = vmatpush2.xpose.msra.mxu0 0.0
      %581 = vmatprep.subr.mxu0 0.0
      %582 = vmatpush2.xpose.msra.mxu0 0.0
      %583 = vmatprep.subr.mxu0 0.0
      %584 = vmatpush2.xpose.msra.mxu0 0.0
      %585 = vmatprep.subr.mxu0 0.0
      %586 = vmatpush2.xpose.msra.mxu0 0.0
      %587 = vmatprep.subr.mxu0 0.0
      %588 = vmatpush2.xpose.msra.mxu0 0.0
      %589 = vmatprep.subr.mxu0 0.0
      %590 = vmatpush2.xpose.msra.mxu0 0.0
      %591 = vmatprep.subr.mxu0 0.0
      %592 = vmatpush2.xpose.msra.mxu0 0.0
      %593 = vmatprep.subr.mxu0 0.0
      %594 = vmatpush2.xpose.msra.mxu0 0.0
      %595 = vmatprep.subr.mxu0 0.0
      %596 = vmatpush2.xpose.msra.mxu0 0.0
      %597 = vmatprep.subr.mxu0 0.0
      %598 = vmatpush2.xpose.msra.mxu0 0.0
      %599 = vmatprep.subr.mxu0 0.0
      %600 = vmatpush2.xpose.msra.mxu0 0.0
      %601 = vmatprep.subr.mxu0 0.0
      %602 = vmatpush2.xpose.msra.mxu0 0.0
      %603 = vmatprep.subr.mxu0 0.0
      %604 = vmatpush2.xpose.msra.mxu0 0.0
      %605 = vmatprep.subr.mxu0 0.0
      %606 = vmatpush2.xpose.msra.mxu0 0.0
      %607 = vmatprep.subr.mxu0 0.0
      %608 = vmatpush2.xpose.msra.mxu0 0.0
      %609 = vmatprep.subr.mxu0 0.0
      %610 = vmatpush2.xpose.msra.mxu0 0.0
      %611 = vmatprep.mubr.f32.mxu0 0.0
      %612 = vmatmul.mubr.f32.gmra.mxu0 %v541
      %v613 = vpop.f32.mrf.mxu0
      %v614 = vadd.f32 0.0, %v613
      %v615 = vpop.f32.mrf.mxu0
      %616 = vmatprep.mubr.f32.mxu0 0.0
      %617 = vmatmul.mubr.f32.gmra.mxu0 %v543
      %v618 = vpop.f32.mrf.mxu0
      %v619 = vadd.f32 0.0, %v618
      %v620 = vpop.f32.mrf.mxu0
      %621 = vdwg.mxu0
      %v622 = vmul.f32 %v614, 0.25
      %v623 = vmul.f32 %v619, 0.25
      %v624 = vadd.f32 %v622, %v247
      %v625 = vadd.f32 %v623, %v247
      %v626 = vsel %vm255, %v624, -inf
      %627 = vmax.xlane.f32.xlu0 %v626
      %v628 = vpop.xlane.xlu0 %627
      %v629 = vsel %vm255, %v625, -inf
      %630 = vmax.xlane.f32.xlu0 %v629
      %v631 = vpop.xlane.xlu0 %630
      %v632 = vsub.f32 %v624, %v628
      %v633 = vsub.f32 %v625, %v631
      %v634 = vmul.f32 %v632, 1.442695
      %v635 = vpow.pop %v634
      %v636 = vmul.f32 %v633, 1.442695
      %v637 = vpow.pop %v636
      %v638 = vsel %vm255, %v635, 0.0
      %639 = vadd.xlane.f32.xlu0 %v638
      %v640 = vpop.xlane.xlu0 %639
      %v641 = vsel %vm255, %v637, 0.0
      %642 = vadd.xlane.f32.xlu0 %v641
      %v643 = vpop.xlane.xlu0 %642
      %v644 = vrcp.pop %v640
      %v645 = vrcp.pop %v643
      %v646 = vmul.f32 %v635, %v644
      %v647 = vmul.f32 %v637, %v645
      %648 = vrot.lane.b32.xlu0 %v244, 16
      %v649 = vpop.permute.xlu0 %648
      %v652 = vsel %vm255, %v646, 0
      %v655 = vsel %vm255, %v647, 0
      %657 = vmatprep.subr.mxu0 0.0
      %658 = vmatpush1.msra.mxu0 0.0
      %659 = vmatprep.subr.mxu0 0.0
      %660 = vmatpush1.msra.mxu0 0.0
      %661 = vmatprep.subr.mxu0 0.0
      %662 = vmatpush1.msra.mxu0 0.0
      %663 = vmatprep.subr.mxu0 0.0
      %664 = vmatpush1.msra.mxu0 0.0
      %665 = vmatprep.subr.mxu0 0.0
      %666 = vmatpush1.msra.mxu0 0.0
      %667 = vmatprep.subr.mxu0 0.0
      %668 = vmatpush1.msra.mxu0 0.0
      %669 = vmatprep.subr.mxu0 0.0
      %670 = vmatpush1.msra.mxu0 0.0
      %671 = vmatprep.subr.mxu0 0.0
      %672 = vmatpush1.msra.mxu0 0.0
      %673 = vmatprep.subr.mxu0 0.0
      %674 = vmatpush1.msra.mxu0 0.0
      %675 = vmatprep.subr.mxu0 0.0
      %676 = vmatpush1.msra.mxu0 0.0
      %677 = vmatprep.subr.mxu0 0.0
      %678 = vmatpush1.msra.mxu0 0.0
      %679 = vmatprep.subr.mxu0 0.0
      %680 = vmatpush1.msra.mxu0 0.0
      %681 = vmatprep.subr.mxu0 0.0
      %682 = vmatpush1.msra.mxu0 0.0
      %683 = vmatprep.subr.mxu0 0.0
      %684 = vmatpush1.msra.mxu0 0.0
      %685 = vmatprep.subr.mxu0 0.0
      %686 = vmatpush1.msra.mxu0 0.0
      %687 = vmatprep.subr.mxu0 0.0
      %688 = vmatpush1.msra.mxu0 %v649
      %689 = vmatprep.subr.mxu0 0.0
      %690 = vmatpush2.msra.mxu0 0.0
      %691 = vmatprep.subr.mxu0 0.0
      %692 = vmatpush2.msra.mxu0 0.0
      %693 = vmatprep.subr.mxu0 0.0
      %694 = vmatpush2.msra.mxu0 0.0
      %695 = vmatprep.subr.mxu0 0.0
      %696 = vmatpush2.msra.mxu0 0.0
      %697 = vmatprep.subr.mxu0 0.0
      %698 = vmatpush2.msra.mxu0 0.0
      %699 = vmatprep.subr.mxu0 0.0
      %700 = vmatpush2.msra.mxu0 0.0
      %701 = vmatprep.subr.mxu0 0.0
      %702 = vmatpush2.msra.mxu0 0.0
      %703 = vmatprep.subr.mxu0 0.0
      %704 = vmatpush2.msra.mxu0 0.0
      %705 = vmatprep.subr.mxu0 0.0
      %706 = vmatpush2.msra.mxu0 0.0
      %707 = vmatprep.subr.mxu0 0.0
      %708 = vmatpush2.msra.mxu0 0.0
      %709 = vmatprep.subr.mxu0 0.0
      %710 = vmatpush2.msra.mxu0 0.0
      %711 = vmatprep.subr.mxu0 0.0
      %712 = vmatpush2.msra.mxu0 0.0
      %713 = vmatprep.subr.mxu0 0.0
      %714 = vmatpush2.msra.mxu0 0.0
      %715 = vmatprep.subr.mxu0 0.0
      %716 = vmatpush2.msra.mxu0 0.0
      %717 = vmatprep.subr.mxu0 0.0
      %718 = vmatpush2.msra.mxu0 0.0
      %719 = vmatprep.subr.mxu0 0.0
      %720 = vmatpush2.msra.mxu0 0.0
      %721 = vmatprep.mubr.f32.mxu0 0.0
      %722 = vmatmul.mubr.f32.gmra.mxu0 %v652
      %v723 = vpop.f32.mrf.mxu0
      %v724 = vadd.f32 0.0, %v723
      %v725 = vpop.f32.mrf.mxu0
      %726 = vmatprep.mubr.f32.mxu0 0.0
      %727 = vmatmul.mubr.f32.gmra.mxu0 %v655
      %v728 = vpop.f32.mrf.mxu0
      %v729 = vadd.f32 0.0, %v728
      %v730 = vpop.f32.mrf.mxu0
      %731 = vdwg.mxu0
      %733 = vrot.lane.b32.xlu0 %v488, 16
      %v734 = vpop.permute.xlu0 %733
      %737 = vrot.lane.b32.xlu0 %v724, 32
      %v738 = vpop.permute.xlu0 %737
      %741 = vrot.lane.b32.xlu0 %v729, 48
      %v742 = vpop.permute.xlu0 %741
      %v744 = vsel %vm298, %v483, %v734
      %vm745 = vcmask 261120
      %v746 = vsel %vm745, %v744, %v738
      %vm747 = vcmask 392192
      %v748 = vsel %vm747, %v746, %v742
      %vm749 = vcmask 523264
      %750 = vst.msk [vmem:[%s243] sm:$0xff] %vm749, %v748
      %p751 = scmp.lt.s32.totalorder %s15, 1
      %s752 = scalar_select %p751, %s15, 1
      %s753 = smul.addr %s752, 8
      %s754 = scalar_lea.vmem %s4, %s753
      // Predicated region
      $region37: #{gemma_forward.8} parent=35 // pred_check
        %p755 = pneg %p137
      $region38: #{gemma_forward.8} parent=35 // pred_check_branch
        %757 = sbr.rel (%p755) target = $region40
      $region39: #{gemma_forward.8} parent=35 // pred_region
        _
      $region40: #{gemma_forward.8} parent=35 // pred_fallthru
        _
    $region36: #{gemma_forward.8} parent=5 // pred_fallthru
      _
    %p758 = scmp.le.s32.totalorder 2, %s10
    // Predicated region
    $region41: #{gemma_forward.8} parent=5 // pred_check
      %p759 = pneg %p758
    $region42: #{gemma_forward.8} parent=5 // pred_check_branch
      %761 = sbr.rel (%p759) target = $region44
    $region43: #{gemma_forward.8} parent=5 // pred_region
      %s762 = ssub.s32 %s10, 2
      // Predicated region
      $region45: #{gemma_forward.8} parent=43 // pred_check
        %p763 = pneg %p143
      $region46: #{gemma_forward.8} parent=43 // pred_check_branch
        %765 = sbr.rel (%p763) target = $region48
      $region47: #{gemma_forward.8} parent=43 // pred_region
        %p766 = scmp.lt.s32.totalorder %s16, 1
        %s767 = scalar_select %p766, %s16, 1
        %s768 = smul.addr %s767, 8
        %s769 = scalar_lea.vmem %s4, %s768
      $region48: #{gemma_forward.8} parent=43 // pred_fallthru
        _
    $region44: #{gemma_forward.8} parent=5 // pred_fallthru
      _
  $region6: #{gemma_forward.8} parent=0 // loop_footer
    %s14 = sadd.s32 1, %s10
  $region7: #{gemma_forward.8} parent=0 // loop_footer_branch
    %9 = sbr.rel target = $region3
  $region8: #{gemma_forward.8} parent=0 // loop_exit
    _

// kernel: gemma_forward.13
$region0: #{gemma_forward.13}
  #allocation0 [shape = 'u32[]', space=smem, size = 0x4, offset = 0x4, fixed_abs, tag = 'smem constant byte address 0x4 - core index']
  #allocation1 [shape = 'u32[144,128]{1,0:T(1,128)}', space=vmem, size = 0x12000, scoped, tag = 'internal scratch']
  %s0 = inlined_call_operand.vmem [shape: f32[16,32], index: 0, kind: input, shape index: {}]
  %s1 = inlined_call_operand.vmem [shape: f32[1,32], index: 1, kind: input, shape index: {}]
  %s2 = inlined_call_operand.vmem [shape: f32[32,128], index: 2, kind: input, shape index: {}]
  %s3 = inlined_call_operand.hbm [shape: f32[16,128], index: 3, kind: output, shape index: {}]
  %s4 = sld [smem:[#allocation0]]
  $region22: #{gemma_forward.13} parent=0
    _
  %s6 = ssub.s32 1, %s4
  %s7 = scalar_select 0, %s6, %s4
  $region1: #{gemma_forward.13} parent=0
    #allocation2 [shape = 'u8[8192]{0}', space=vmem, size = 0x2000, scoped, tag = 'output window, operand 0, single buffered']
    #allocation3 [shape = 's32[1]{0}', space=sflag, size = 0x4, scoped, tag = 'scoped memory for gemma_forward.13']
    %8 = vsyncpa [#allocation3], 0
    // Predicated region
    $region2: #{gemma_forward.13} parent=1 // pred_check
      _
    $region3: #{gemma_forward.13} parent=1 // pred_check_branch
      %10 = sbr.rel (0) target = $region5
    $region4: #{gemma_forward.13} parent=1 // pred_region
      _
    $region5: #{gemma_forward.13} parent=1 // pred_fallthru
      _
    // Predicated region
    $region6: #{gemma_forward.13} parent=1 // pred_check
      _
    $region7: #{gemma_forward.13} parent=1 // pred_check_branch
      %12 = sbr.rel (0) target = $region9
    $region8: #{gemma_forward.13} parent=1 // pred_region
      _
    $region9: #{gemma_forward.13} parent=1 // pred_fallthru
      _
    // Predicated region
    $region10: #{gemma_forward.13} parent=1 // pred_check
      _
    $region11: #{gemma_forward.13} parent=1 // pred_check_branch
      %14 = sbr.rel (0) target = $region13
    $region12: #{gemma_forward.13} parent=1 // pred_region
      _
    $region13: #{gemma_forward.13} parent=1 // pred_fallthru
      _
    %v15 = vld [vmem:[%s0] sm:$0xff]
    %v16 = vld [vmem:[%s0 + $0x8] sm:$0xff]
    %v17 = vmul.f32 %v15, %v15
    %v18 = vmul.f32 %v16, %v16
    %vm19 = vcmask 261120
    %v20 = vsel %vm19, %v17, 0.0
    %21 = vadd.xlane.f32.xlu0 %v20
    %v22 = vpop.xlane.xlu0 %21
    %v23 = vsel %vm19, %v18, 0.0
    %24 = vadd.xlane.f32.xlu0 %v23
    %v25 = vpop.xlane.xlu0 %24
    %v26 = vrcp.pop 32.0
    %v27 = vmul.f32 %v22, %v26
    %v28 = vmul.f32 %v25, %v26
    %v29 = vadd.f32 %v27, 1e-06
    %v30 = vadd.f32 %v28, 1e-06
    %v31 = vrsqrt.pop %v29
    %v32 = vrsqrt.pop %v30
    %v33 = vmul.f32 %v15, %v31
    %v34 = vmul.f32 %v16, %v32
    %v35 = vld [vmem:[%s1] sm:$0x1]
    %v36 = vadd.f32 %v35, 1.0
    %v38 = vlaneseq
    %v39 = vshrl.u32 %v38, 7
    %v40 = vsub.s32 0, %v39
    %v41 = vrot.slane %v36, %v40
    %v43 = vmul.f32 %v33, %v41
    %v44 = vmul.f32 %v34, %v41
    %v45 = vld [vmem:[%s2] sm:$0xff]
    %v46 = vld [vmem:[%s2 + $0x8] sm:$0xff]
    %v47 = vld [vmem:[%s2 + $0x10] sm:$0xff]
    %v48 = vld [vmem:[%s2 + $0x18] sm:$0xff]
    %v50 = vsel %vm19, %v43, 0
    %v53 = vsel %vm19, %v44, 0
    %55 = vmatprep.subr.mxu0 0.0
    %56 = vmatpush1.msra.mxu0 0.0
    %57 = vmatprep.subr.mxu0 0.0
    %58 = vmatpush1.msra.mxu0 0.0
    %59 = vmatprep.subr.mxu0 0.0
    %60 = vmatpush1.msra.mxu0 0.0
    %61 = vmatprep.subr.mxu0 0.0
    %62 = vmatpush1.msra.mxu0 0.0
    %63 = vmatprep.subr.mxu0 0.0
    %64 = vmatpush1.msra.mxu0 0.0
    %65 = vmatprep.subr.mxu0 0.0
    %66 = vmatpush1.msra.mxu0 0.0
    %67 = vmatprep.subr.mxu0 0.0
    %68 = vmatpush1.msra.mxu0 0.0
    %69 = vmatprep.subr.mxu0 0.0
    %70 = vmatpush1.msra.mxu0 0.0
    %71 = vmatprep.subr.mxu0 0.0
    %72 = vmatpush1.msra.mxu0 0.0
    %73 = vmatprep.subr.mxu0 0.0
    %74 = vmatpush1.msra.mxu0 0.0
    %75 = vmatprep.subr.mxu0 0.0
    %76 = vmatpush1.msra.mxu0 0.0
    %77 = vmatprep.subr.mxu0 0.0
    %78 = vmatpush1.msra.mxu0 0.0
    %79 = vmatprep.subr.mxu0 0.0
    %80 = vmatpush1.msra.mxu0 %v48
    %81 = vmatprep.subr.mxu0 0.0
    %82 = vmatpush1.msra.mxu0 %v47
    %83 = vmatprep.subr.mxu0 0.0
    %84 = vmatpush1.msra.mxu0 %v46
    %85 = vmatprep.subr.mxu0 0.0
    %86 = vmatpush1.msra.mxu0 %v45
    %87 = vmatprep.subr.mxu0 0.0
    %88 = vmatpush2.msra.mxu0 0.0
    %89 = vmatprep.subr.mxu0 0.0
    %90 = vmatpush2.msra.mxu0 0.0
    %91 = vmatprep.subr.mxu0 0.0
    %92 = vmatpush2.msra.mxu0 0.0
    %93 = vmatprep.subr.mxu0 0.0
    %94 = vmatpush2.msra.mxu0 0.0
    %95 = vmatprep.subr.mxu0 0.0
    %96 = vmatpush2.msra.mxu0 0.0
    %97 = vmatprep.subr.mxu0 0.0
    %98 = vmatpush2.msra.mxu0 0.0
    %99 = vmatprep.subr.mxu0 0.0
    %100 = vmatpush2.msra.mxu0 0.0
    %101 = vmatprep.subr.mxu0 0.0
    %102 = vmatpush2.msra.mxu0 0.0
    %103 = vmatprep.subr.mxu0 0.0
    %104 = vmatpush2.msra.mxu0 0.0
    %105 = vmatprep.subr.mxu0 0.0
    %106 = vmatpush2.msra.mxu0 0.0
    %107 = vmatprep.subr.mxu0 0.0
    %108 = vmatpush2.msra.mxu0 0.0
    %109 = vmatprep.subr.mxu0 0.0
    %110 = vmatpush2.msra.mxu0 0.0
    %111 = vmatprep.subr.mxu0 0.0
    %112 = vmatpush2.msra.mxu0 0.0
    %113 = vmatprep.subr.mxu0 0.0
    %114 = vmatpush2.msra.mxu0 0.0
    %115 = vmatprep.subr.mxu0 0.0
    %116 = vmatpush2.msra.mxu0 0.0
    %117 = vmatprep.subr.mxu0 0.0
    %118 = vmatpush2.msra.mxu0 0.0
    %119 = vmatprep.mubr.f32.mxu0 0.0
    %120 = vmatmul.mubr.f32.gmra.mxu0 %v50
    %v121 = vpop.f32.mrf.mxu0
    %v122 = vadd.f32 0.0, %v121
    %v123 = vpop.f32.mrf.mxu0
    %124 = vmatprep.mubr.f32.mxu0 0.0
    %125 = vmatmul.mubr.f32.gmra.mxu0 %v53
    %v126 = vpop.f32.mrf.mxu0
    %v127 = vadd.f32 0.0, %v126
    %v128 = vpop.f32.mrf.mxu0
    %129 = vdwg.mxu0
    %130 = vst [vmem:[#allocation2] sm:$0xff] %v122
    %131 = vst [vmem:[#allocation2 + $0x8] sm:$0xff] %v127
    // Predicated region
    $region14: #{gemma_forward.13} parent=1 // pred_check
      _
    $region15: #{gemma_forward.13} parent=1 // pred_check_branch
      %133 = sbr.rel (0) target = $region17
    $region16: #{gemma_forward.13} parent=1 // pred_region
      %s135 = ssub.s32 256, 256
      %136 = vsyncadd [#allocation3], %s135
      %s137 = sshll.u32 [#allocation2], 4
      %s138 = int_to_ptr.vmem [resolvable:$true] %s137
      %143 = dma.vmem_to_hbm [thread:$0]  %s138, 256, %s3, [#allocation3], 128, 128, 8
    $region17: #{gemma_forward.13} parent=1 // pred_fallthru
      _
    // Predicated region
    $region18: #{gemma_forward.13} parent=1 // pred_check
      _
    $region19: #{gemma_forward.13} parent=1 // pred_check_branch
      %145 = sbr.rel (0) target = $region21
    $region20: #{gemma_forward.13} parent=1 // pred_region
      %146 = dma.done [#allocation3], 256
    $region21: #{gemma_forward.13} parent=1 // pred_fallthru
      _
    %147 = vsyncpa [#allocation3], 1

// kernel: gemma_forward.9
$region0: #{gemma_forward.9}
  #allocation0 [shape = 'u32[]', space=smem, size = 0x4, offset = 0x4, fixed_abs, tag = 'smem constant byte address 0x4 - core index']
  #allocation1 [shape = 'u32[144,128]{1,0:T(1,128)}', space=vmem, size = 0x12000, scoped, tag = 'internal scratch']
  %s0 = inlined_call_operand.vmem [shape: f32[16,64], index: 0, kind: input, shape index: {}]
  %s1 = inlined_call_operand.vmem [shape: f32[16,32], index: 1, kind: input, shape index: {}]
  %s2 = inlined_call_operand.vmem [shape: f32[64,32], index: 2, kind: input, shape index: {}]
  %s3 = inlined_call_operand.vmem [shape: f32[1,32], index: 3, kind: input, shape index: {}]
  %s4 = inlined_call_operand.vmem [shape: f32[32,64], index: 4, kind: input, shape index: {}]
  %s5 = inlined_call_operand.vmem [shape: f32[32,64], index: 5, kind: input, shape index: {}]
  %s6 = inlined_call_operand.vmem [shape: f32[64,32], index: 6, kind: input, shape index: {}]
  %s7 = inlined_call_operand.vmem [shape: f32[16,32], index: 7, kind: output, shape index: {}]
  %s8 = sld [smem:[#allocation0]]
  $region38: #{gemma_forward.9} parent=0
    _
  %s10 = ssub.s32 1, %s8
  %s11 = scalar_select 0, %s10, %s8
  // Predicated region
  $region2: #{gemma_forward.9} parent=0 // pred_check
    _
  $region3: #{gemma_forward.9} parent=0 // pred_check_branch
    %13 = sbr.rel (0) target = $region5
  $region4: #{gemma_forward.9} parent=0 // pred_region
    _
  $region5: #{gemma_forward.9} parent=0 // pred_fallthru
    _
  // Predicated region
  $region6: #{gemma_forward.9} parent=0 // pred_check
    _
  $region7: #{gemma_forward.9} parent=0 // pred_check_branch
    %15 = sbr.rel (0) target = $region9
  $region8: #{gemma_forward.9} parent=0 // pred_region
    _
  $region9: #{gemma_forward.9} parent=0 // pred_fallthru
    _
  // Predicated region
  $region10: #{gemma_forward.9} parent=0 // pred_check
    _
  $region11: #{gemma_forward.9} parent=0 // pred_check_branch
    %17 = sbr.rel (0) target = $region13
  $region12: #{gemma_forward.9} parent=0 // pred_region
    _
  $region13: #{gemma_forward.9} parent=0 // pred_fallthru
    _
  // Predicated region
  $region14: #{gemma_forward.9} parent=0 // pred_check
    _
  $region15: #{gemma_forward.9} parent=0 // pred_check_branch
    %19 = sbr.rel (0) target = $region17
  $region16: #{gemma_forward.9} parent=0 // pred_region
    _
  $region17: #{gemma_forward.9} parent=0 // pred_fallthru
    _
  // Predicated region
  $region18: #{gemma_forward.9} parent=0 // pred_check
    _
  $region19: #{gemma_forward.9} parent=0 // pred_check_branch
    %21 = sbr.rel (0) target = $region21
  $region20: #{gemma_forward.9} parent=0 // pred_region
    _
  $region21: #{gemma_forward.9} parent=0 // pred_fallthru
    _
  // Predicated region
  $region22: #{gemma_forward.9} parent=0 // pred_check
    _
  $region23: #{gemma_forward.9} parent=0 // pred_check_branch
    %23 = sbr.rel (0) target = $region25
  $region24: #{gemma_forward.9} parent=0 // pred_region
    _
  $region25: #{gemma_forward.9} parent=0 // pred_fallthru
    _
  // Predicated region
  $region26: #{gemma_forward.9} parent=0 // pred_check
    _
  $region27: #{gemma_forward.9} parent=0 // pred_check_branch
    %25 = sbr.rel (0) target = $region29
  $region28: #{gemma_forward.9} parent=0 // pred_region
    _
  $region29: #{gemma_forward.9} parent=0 // pred_fallthru
    _
  %v26 = vld [vmem:[%s0] sm:$0xff]
  %v27 = vld [vmem:[%s0 + $0x8] sm:$0xff]
  %v28 = vld [vmem:[%s1] sm:$0xff]
  %v29 = vld [vmem:[%s1 + $0x8] sm:$0xff]
  %v30 = vld [vmem:[%s2] sm:$0xff]
  %v31 = vld [vmem:[%s2 + $0x8] sm:$0xff]
  %v32 = vld [vmem:[%s2 + $0x10] sm:$0xff]
  %v33 = vld [vmem:[%s2 + $0x18] sm:$0xff]
  %v34 = vld [vmem:[%s2 + $0x20] sm:$0xff]
  %v35 = vld [vmem:[%s2 + $0x28] sm:$0xff]
  %v36 = vld [vmem:[%s2 + $0x30] sm:$0xff]
  %v37 = vld [vmem:[%s2 + $0x38] sm:$0xff]
  %vm38 = vcmask 523264
  %v40 = vsel %vm38, %v26, 0
  %v43 = vsel %vm38, %v27, 0
  %45 = vmatprep.subr.mxu0 0.0
  %46 = vmatpush1.msra.mxu0 0.0
  %47 = vmatprep.subr.mxu0 0.0
  %48 = vmatpush1.msra.mxu0 0.0
  %49 = vmatprep.subr.mxu0 0.0
  %50 = vmatpush1.msra.mxu0 0.0
  %51 = vmatprep.subr.mxu0 0.0
  %52 = vmatpush1.msra.mxu0 0.0
  %53 = vmatprep.subr.mxu0 0.0
  %54 = vmatpush1.msra.mxu0 0.0
  %55 = vmatprep.subr.mxu0 0.0
  %56 = vmatpush1.msra.mxu0 0.0
  %57 = vmatprep.subr.mxu0 0.0
  %58 = vmatpush1.msra.mxu0 0.0
  %59 = vmatprep.subr.mxu0 0.0
  %60 = vmatpush1.msra.mxu0 0.0
  %61 = vmatprep.subr.mxu0 0.0
  %62 = vmatpush1.msra.mxu0 %v37
  %63 = vmatprep.subr.mxu0 0.0
  %64 = vmatpush1.msra.mxu0 %v36
  %65 = vmatprep.subr.mxu0 0.0
  %66 = vmatpush1.msra.mxu0 %v35
  %67 = vmatprep.subr.mxu0 0.0
  %68 = vmatpush1.msra.mxu0 %v34
  %69 = vmatprep.subr.mxu0 0.0
  %70 = vmatpush1.msra.mxu0 %v33
  %71 = vmatprep.subr.mxu0 0.0
  %72 = vmatpush1.msra.mxu0 %v32
  %73 = vmatprep.subr.mxu0 0.0
  %74 = vmatpush1.msra.mxu0 %v31
  %75 = vmatprep.subr.mxu0 0.0
  %76 = vmatpush1.msra.mxu0 %v30
  %77 = vmatprep.subr.mxu0 0.0
  %78 = vmatpush2.msra.mxu0 0.0
  %79 = vmatprep.subr.mxu0 0.0
  %80 = vmatpush2.msra.mxu0 0.0
  %81 = vmatprep.subr.mxu0 0.0
  %82 = vmatpush2.msra.mxu0 0.0
  %83 = vmatprep.subr.mxu0 0.0
  %84 = vmatpush2.msra.mxu0 0.0
  %85 = vmatprep.subr.mxu0 0.0
  %86 = vmatpush2.msra.mxu0 0.0
  %87 = vmatprep.subr.mxu0 0.0
  %88 = vmatpush2.msra.mxu0 0.0
  %89 = vmatprep.subr.mxu0 0.0
  %90 = vmatpush2.msra.mxu0 0.0
  %91 = vmatprep.subr.mxu0 0.0
  %92 = vmatpush2.msra.mxu0 0.0
  %93 = vmatprep.subr.mxu0 0.0
  %94 = vmatpush2.msra.mxu0 0.0
  %95 = vmatprep.subr.mxu0 0.0
  %96 = vmatpush2.msra.mxu0 0.0
  %97 = vmatprep.subr.mxu0 0.0
  %98 = vmatpush2.msra.mxu0 0.0
  %99 = vmatprep.subr.mxu0 0.0
  %100 = vmatpush2.msra.mxu0 0.0
  %101 = vmatprep.subr.mxu0 0.0
  %102 = vmatpush2.msra.mxu0 0.0
  %103 = vmatprep.subr.mxu0 0.0
  %104 = vmatpush2.msra.mxu0 0.0
  %105 = vmatprep.subr.mxu0 0.0
  %106 = vmatpush2.msra.mxu0 0.0
  %107 = vmatprep.subr.mxu0 0.0
  %108 = vmatpush2.msra.mxu0 0.0
  %109 = vmatprep.mubr.f32.mxu0 0.0
  %110 = vmatmul.mubr.f32.gmra.mxu0 %v40
  %v111 = vpop.f32.mrf.mxu0
  %v112 = vadd.f32 0.0, %v111
  %v113 = vpop.f32.mrf.mxu0
  %114 = vmatprep.mubr.f32.mxu0 0.0
  %115 = vmatmul.mubr.f32.gmra.mxu0 %v43
  %v116 = vpop.f32.mrf.mxu0
  %v117 = vadd.f32 0.0, %v116
  %v118 = vpop.f32.mrf.mxu0
  %119 = vdwg.mxu0
  %v120 = vadd.f32 %v28, %v112
  %v121 = vadd.f32 %v29, %v117
  %v122 = vmul.f32 %v120, %v120
  %v123 = vmul.f32 %v121, %v121
  %vm124 = vcmask 261120
  %v125 = vsel %vm124, %v122, 0.0
  %126 = vadd.xlane.f32.xlu0 %v125
  %v127 = vpop.xlane.xlu0 %126
  %v128 = vsel %vm124, %v123, 0.0
  %129 = vadd.xlane.f32.xlu0 %v128
  %v130 = vpop.xlane.xlu0 %129
  %v131 = vrcp.pop 32.0
  %v132 = vmul.f32 %v127, %v131
  %v133 = vmul.f32 %v130, %v131
  %v134 = vadd.f32 %v132, 1e-06
  %v135 = vadd.f32 %v133, 1e-06
  %v136 = vrsqrt.pop %v134
  %v137 = vrsqrt.pop %v135
  %v138 = vmul.f32 %v120, %v136
  %v139 = vmul.f32 %v121, %v137
  %v140 = vld [vmem:[%s3] sm:$0x1]
  %v141 = vadd.f32 %v140, 1.0
  %v143 = vlaneseq
  %v144 = vshrl.u32 %v143, 7
  %v145 = vsub.s32 0, %v144
  %v146 = vrot.slane %v141, %v145
  %v148 = vmul.f32 %v138, %v146
  %v149 = vmul.f32 %v139, %v146
  %v150 = vld [vmem:[%s4] sm:$0xff]
  %v151 = vld [vmem:[%s4 + $0x8] sm:$0xff]
  %v152 = vld [vmem:[%s4 + $0x10] sm:$0xff]
  %v153 = vld [vmem:[%s4 + $0x18] sm:$0xff]
  %v155 = vsel %vm124, %v148, 0
  %v158 = vsel %vm124, %v149, 0
  %160 = vmatprep.subr.mxu0 0.0
  %161 = vmatpush1.msra.mxu0 0.0
  %162 = vmatprep.subr.mxu0 0.0
  %163 = vmatpush1.msra.mxu0 0.0
  %164 = vmatprep.subr.mxu0 0.0
  %165 = vmatpush1.msra.mxu0 0.0
  %166 = vmatprep.subr.mxu0 0.0
  %167 = vmatpush1.msra.mxu0 0.0
  %168 = vmatprep.subr.mxu0 0.0
  %169 = vmatpush1.msra.mxu0 0.0
  %170 = vmatprep.subr.mxu0 0.0
  %171 = vmatpush1.msra.mxu0 0.0
  %172 = vmatprep.subr.mxu0 0.0
  %173 = vmatpush1.msra.mxu0 0.0
  %174 = vmatprep.subr.mxu0 0.0
  %175 = vmatpush1.msra.mxu0 0.0
  %176 = vmatprep.subr.mxu0 0.0
  %177 = vmatpush1.msra.mxu0 0.0
  %178 = vmatprep.subr.mxu0 0.0
  %179 = vmatpush1.msra.mxu0 0.0
  %180 = vmatprep.subr.mxu0 0.0
  %181 = vmatpush1.msra.mxu0 0.0
  %182 = vmatprep.subr.mxu0 0.0
  %183 = vmatpush1.msra.mxu0 0.0
  %184 = vmatprep.subr.mxu0 0.0
  %185 = vmatpush1.msra.mxu0 %v153
  %186 = vmatprep.subr.mxu0 0.0
  %187 = vmatpush1.msra.mxu0 %v152
  %188 = vmatprep.subr.mxu0 0.0
  %189 = vmatpush1.msra.mxu0 %v151
  %190 = vmatprep.subr.mxu0 0.0
  %191 = vmatpush1.msra.mxu0 %v150
  %192 = vmatprep.subr.mxu0 0.0
  %193 = vmatpush2.msra.mxu0 0.0
  %194 = vmatprep.subr.mxu0 0.0
  %195 = vmatpush2.msra.mxu0 0.0
  %196 = vmatprep.subr.mxu0 0.0
  %197 = vmatpush2.msra.mxu0 0.0
  %198 = vmatprep.subr.mxu0 0.0
  %199 = vmatpush2.msra.mxu0 0.0
  %200 = vmatprep.subr.mxu0 0.0
  %201 = vmatpush2.msra.mxu0 0.0
  %202 = vmatprep.subr.mxu0 0.0
  %203 = vmatpush2.msra.mxu0 0.0
  %204 = vmatprep.subr.mxu0 0.0
  %205 = vmatpush2.msra.mxu0 0.0
  %206 = vmatprep.subr.mxu0 0.0
  %207 = vmatpush2.msra.mxu0 0.0
  %208 = vmatprep.subr.mxu0 0.0
  %209 = vmatpush2.msra.mxu0 0.0
  %210 = vmatprep.subr.mxu0 0.0
  %211 = vmatpush2.msra.mxu0 0.0
  %212 = vmatprep.subr.mxu0 0.0
  %213 = vmatpush2.msra.mxu0 0.0
  %214 = vmatprep.subr.mxu0 0.0
  %215 = vmatpush2.msra.mxu0 0.0
  %216 = vmatprep.subr.mxu0 0.0
  %217 = vmatpush2.msra.mxu0 0.0
  %218 = vmatprep.subr.mxu0 0.0
  %219 = vmatpush2.msra.mxu0 0.0
  %220 = vmatprep.subr.mxu0 0.0
  %221 = vmatpush2.msra.mxu0 0.0
  %222 = vmatprep.subr.mxu0 0.0
  %223 = vmatpush2.msra.mxu0 0.0
  %224 = vmatprep.mubr.f32.mxu0 0.0
  %225 = vmatmul.mubr.f32.gmra.mxu0 %v155
  %v226 = vpop.f32.mrf.mxu0
  %v227 = vadd.f32 0.0, %v226
  %v228 = vpop.f32.mrf.mxu0
  %229 = vmatprep.mubr.f32.mxu0 0.0
  %230 = vmatmul.mubr.f32.gmra.mxu0 %v158
  %v231 = vpop.f32.mrf.mxu0
  %v232 = vadd.f32 0.0, %v231
  %v233 = vpop.f32.mrf.mxu0
  %234 = vdwg.mxu0
  %v235 = vld [vmem:[%s5] sm:$0xff]
  %v236 = vld [vmem:[%s5 + $0x8] sm:$0xff]
  %v237 = vld [vmem:[%s5 + $0x10] sm:$0xff]
  %v238 = vld [vmem:[%s5 + $0x18] sm:$0xff]
  %239 = vmatprep.subr.mxu0 0.0
  %240 = vmatpush1.msra.mxu0 0.0
  %241 = vmatprep.subr.mxu0 0.0
  %242 = vmatpush1.msra.mxu0 0.0
  %243 = vmatprep.subr.mxu0 0.0
  %244 = vmatpush1.msra.mxu0 0.0
  %245 = vmatprep.subr.mxu0 0.0
  %246 = vmatpush1.msra.mxu0 0.0
  %247 = vmatprep.subr.mxu0 0.0
  %248 = vmatpush1.msra.mxu0 0.0
  %249 = vmatprep.subr.mxu0 0.0
  %250 = vmatpush1.msra.mxu0 0.0
  %251 = vmatprep.subr.mxu0 0.0
  %252 = vmatpush1.msra.mxu0 0.0
  %253 = vmatprep.subr.mxu0 0.0
  %254 = vmatpush1.msra.mxu0 0.0
  %255 = vmatprep.subr.mxu0 0.0
  %256 = vmatpush1.msra.mxu0 0.0
  %257 = vmatprep.subr.mxu0 0.0
  %258 = vmatpush1.msra.mxu0 0.0
  %259 = vmatprep.subr.mxu0 0.0
  %260 = vmatpush1.msra.mxu0 0.0
  %261 = vmatprep.subr.mxu0 0.0
  %262 = vmatpush1.msra.mxu0 0.0
  %263 = vmatprep.subr.mxu0 0.0
  %264 = vmatpush1.msra.mxu0 %v238
  %265 = vmatprep.subr.mxu0 0.0
  %266 = vmatpush1.msra.mxu0 %v237
  %267 = vmatprep.subr.mxu0 0.0
  %268 = vmatpush1.msra.mxu0 %v236
  %269 = vmatprep.subr.mxu0 0.0
  %270 = vmatpush1.msra.mxu0 %v235
  %271 = vmatprep.subr.mxu0 0.0
  %272 = vmatpush2.msra.mxu0 0.0
  %273 = vmatprep.subr.mxu0 0.0
  %274 = vmatpush2.msra.mxu0 0.0
  %275 = vmatprep.subr.mxu0 0.0
  %276 = vmatpush2.msra.mxu0 0.0
  %277 = vmatprep.subr.mxu0 0.0
  %278 = vmatpush2.msra.mxu0 0.0
  %279 = vmatprep.subr.mxu0 0.0
  %280 = vmatpush2.msra.mxu0 0.0
  %281 = vmatprep.subr.mxu0 0.0
  %282 = vmatpush2.msra.mxu0 0.0
  %283 = vmatprep.subr.mxu0 0.0
  %284 = vmatpush2.msra.mxu0 0.0
  %285 = vmatprep.subr.mxu0 0.0
  %286 = vmatpush2.msra.mxu0 0.0
  %287 = vmatprep.subr.mxu0 0.0
  %288 = vmatpush2.msra.mxu0 0.0
  %289 = vmatprep.subr.mxu0 0.0
  %290 = vmatpush2.msra.mxu0 0.0
  %291 = vmatprep.subr.mxu0 0.0
  %292 = vmatpush2.msra.mxu0 0.0
  %293 = vmatprep.subr.mxu0 0.0
  %294 = vmatpush2.msra.mxu0 0.0
  %295 = vmatprep.subr.mxu0 0.0
  %296 = vmatpush2.msra.mxu0 0.0
  %297 = vmatprep.subr.mxu0 0.0
  %298 = vmatpush2.msra.mxu0 0.0
  %299 = vmatprep.subr.mxu0 0.0
  %300 = vmatpush2.msra.mxu0 0.0
  %301 = vmatprep.subr.mxu0 0.0
  %302 = vmatpush2.msra.mxu0 0.0
  %303 = vmatprep.mubr.f32.mxu0 0.0
  %304 = vmatmul.mubr.f32.gmra.mxu0 %v155
  %v305 = vpop.f32.mrf.mxu0
  %v306 = vadd.f32 0.0, %v305
  %v307 = vpop.f32.mrf.mxu0
  %308 = vmatprep.mubr.f32.mxu0 0.0
  %309 = vmatmul.mubr.f32.gmra.mxu0 %v158
  %v310 = vpop.f32.mrf.mxu0
  %v311 = vadd.f32 0.0, %v310
  %v312 = vpop.f32.mrf.mxu0
  %313 = vdwg.mxu0
  %v314 = vmul.f32 %v227, 0.5
  %v315 = vmul.f32 %v232, 0.5
  %v316 = vmul.f32 %v227, 0.044715
  %v317 = vmul.f32 %v232, 0.044715
  %v318 = vmul.f32 %v316, %v227
  %v319 = vmul.f32 %v317, %v232
  %v320 = vmul.f32 %v318, %v227
  %v321 = vmul.f32 %v319, %v232
  %v322 = vadd.f32 %v227, %v320
  %v323 = vadd.f32 %v232, %v321
  %v324 = vmul.f32 %v322, 0.7978846
  %v325 = vmul.f32 %v323, 0.7978846
  %v326 = vtanh.pop %v324
  %v327 = vtanh.pop %v325
  %v328 = vadd.f32 %v326, 1.0
  %v329 = vadd.f32 %v327, 1.0
  %v330 = vmul.f32 %v314, %v328
  %v331 = vmul.f32 %v315, %v329
  %v332 = vmul.f32 %v330, %v306
  %v333 = vmul.f32 %v331, %v311
  %v334 = vld [vmem:[%s6] sm:$0xff]
  %v335 = vld [vmem:[%s6 + $0x8] sm:$0xff]
  %v336 = vld [vmem:[%s6 + $0x10] sm:$0xff]
  %v337 = vld [vmem:[%s6 + $0x18] sm:$0xff]
  %v338 = vld [vmem:[%s6 + $0x20] sm:$0xff]
  %v339 = vld [vmem:[%s6 + $0x28] sm:$0xff]
  %v340 = vld [vmem:[%s6 + $0x30] sm:$0xff]
  %v341 = vld [vmem:[%s6 + $0x38] sm:$0xff]
  %v343 = vsel %vm38, %v332, 0
  %v346 = vsel %vm38, %v333, 0
  %348 = vmatprep.subr.mxu0 0.0
  %349 = vmatpush1.msra.mxu0 0.0
  %350 = vmatprep.subr.mxu0 0.0
  %351 = vmatpush1.msra.mxu0 0.0
  %352 = vmatprep.subr.mxu0 0.0
  %353 = vmatpush1.msra.mxu0 0.0
  %354 = vmatprep.subr.mxu0 0.0
  %355 = vmatpush1.msra.mxu0 0.0
  %356 = vmatprep.subr.mxu0 0.0
  %357 = vmatpush1.msra.mxu0 0.0
  %358 = vmatprep.subr.mxu0 0.0
  %359 = vmatpush1.msra.mxu0 0.0
  %360 = vmatprep.subr.mxu0 0.0
  %361 = vmatpush1.msra.mxu0 0.0
  %362 = vmatprep.subr.mxu0 0.0
  %363 = vmatpush1.msra.mxu0 0.0
  %364 = vmatprep.subr.mxu0 0.0
  %365 = vmatpush1.msra.mxu0 %v341
  %366 = vmatprep.subr.mxu0 0.0
  %367 = vmatpush1.msra.mxu0 %v340
  %368 = vmatprep.subr.mxu0 0.0
  %369 = vmatpush1.msra.mxu0 %v339
  %370 = vmatprep.subr.mxu0 0.0
  %371 = vmatpush1.msra.mxu0 %v338
  %372 = vmatprep.subr.mxu0 0.0
  %373 = vmatpush1.msra.mxu0 %v337
  %374 = vmatprep.subr.mxu0 0.0
  %375 = vmatpush1.msra.mxu0 %v336
  %376 = vmatprep.subr.mxu0 0.0
  %377 = vmatpush1.msra.mxu0 %v335
  %378 = vmatprep.subr.mxu0 0.0
  %379 = vmatpush1.msra.mxu0 %v334
  %380 = vmatprep.subr.mxu0 0.0
  %381 = vmatpush2.msra.mxu0 0.0
  %382 = vmatprep.subr.mxu0 0.0
  %383 = vmatpush2.msra.mxu0 0.0
  %384 = vmatprep.subr.mxu0 0.0
  %385 = vmatpush2.msra.mxu0 0.0
  %386 = vmatprep.subr.mxu0 0.0
  %387 = vmatpush2.msra.mxu0 0.0
  %388 = vmatprep.subr.mxu0 0.0
  %389 = vmatpush2.msra.mxu0 0.0
  %390 = vmatprep.subr.mxu0 0.0
  %391 = vmatpush2.msra.mxu0 0.0
  %392 = vmatprep.subr.mxu0 0.0
  %393 = vmatpush2.msra.mxu0 0.0
  %394 = vmatprep.subr.mxu0 0.0
  %395 = vmatpush2.msra.mxu0 0.0
  %396 = vmatprep.subr.mxu0 0.0
  %397 = vmatpush2.msra.mxu0 0.0
  %398 = vmatprep.subr.mxu0 0.0
  %399 = vmatpush2.msra.mxu0 0.0
  %400 = vmatprep.subr.mxu0 0.0
  %401 = vmatpush2.msra.mxu0 0.0
  %402 = vmatprep.subr.mxu0 0.0
  %403 = vmatpush2.msra.mxu0 0.0
  %404 = vmatprep.subr.mxu0 0.0
  %405 = vmatpush2.msra.mxu0 0.0
  %406 = vmatprep.subr.mxu0 0.0
  %407 = vmatpush2.msra.mxu0 0.0
  %408 = vmatprep.subr.mxu0 0.0
  %409 = vmatpush2.msra.mxu0 0.0
  %410 = vmatprep.subr.mxu0 0.0
  %411 = vmatpush2.msra.mxu0 0.0
  %412 = vmatprep.mubr.f32.mxu0 0.0
  %413 = vmatmul.mubr.f32.gmra.mxu0 %v343
  %v414 = vpop.f32.mrf.mxu0
  %v415 = vadd.f32 0.0, %v414
  %v416 = vpop.f32.mrf.mxu0
  %417 = vmatprep.mubr.f32.mxu0 0.0
  %418 = vmatmul.mubr.f32.gmra.mxu0 %v346
  %v419 = vpop.f32.mrf.mxu0
  %v420 = vadd.f32 0.0, %v419
  %v421 = vpop.f32.mrf.mxu0
  %422 = vdwg.mxu0
  %v423 = vadd.f32 %v120, %v415
  %v424 = vadd.f32 %v121, %v420
  %425 = vst.msk [vmem:[%s7] sm:$0xff] %vm124, %v423
  %426 = vst.msk [vmem:[%s7 + $0x8] sm:$0xff] %vm124, %v424
  // Predicated region
  $region30: #{gemma_forward.9} parent=0 // pred_check
    _
  $region31: #{gemma_forward.9} parent=0 // pred_check_branch
    %428 = sbr.rel (0) target = $region33
  $region32: #{gemma_forward.9} parent=0 // pred_region
    _
  $region33: #{gemma_forward.9} parent=0 // pred_fallthru
    _
  // Predicated region
  $region34: #{gemma_forward.9} parent=0 // pred_check
    _
  $region35: #{gemma_forward.9} parent=0 // pred_check_branch
    %430 = sbr.rel (0) target = $region37
  $region36: #{gemma_forward.9} parent=0 // pred_region
    _
  $region37: #{gemma_forward.9} parent=0 // pred_fallthru
    _

</llo_original>
